<compile_context>
chip_gen: v6e
topology: v6e:2x2x1
jax: 0.10.0
libtpu: 0.0.40
codegen_flags: <defaults>
</compile_context>

<pallas_src>
import jax
import jax.numpy as jnp
from jax import lax
from jax.experimental import pallas as pl
from jax.experimental.pallas import tpu as pltpu


# ----------------------------------------------------------------------------- helpers
def _round_up(x, m):
    return (x + m - 1) // m * m


def _argmax_last(x):
    """argmax over the last axis, first-index tie-break (TPU-friendly lowering)."""
    n = x.shape[-1]
    iota = lax.broadcasted_iota(jnp.int32, x.shape, x.ndim - 1)
    maxv = jnp.max(x, axis=-1, keepdims=True)
    return jnp.min(jnp.where(x == maxv, iota, jnp.int32(n)), axis=-1).astype(jnp.int32)


# ----------------------------------------------------------------------------- kernel 1:
# fused label heads:  logits = x @ W_cat_pad + b_cat_pad     (W_cat_pad = [H, NLp>=128])
def fused_heads_kernel(x_ref, w_ref, b_ref, o_ref):
    # x_ref: [tile, H] f32 (cast to bf16 in-kernel -> no separate HBM cast pass)
    # w_ref: [H, NLp] bf16   b_ref: [1, NLp] f32   o_ref: [tile, NLp] f32 (lane-dense)
    x = x_ref[...].astype(jnp.bfloat16)
    o_ref[...] = (
        jnp.dot(x, w_ref[...], preferred_element_type=jnp.float32) + b_ref[...]
    )


def run_fused_heads(x2d, w_pad, b_pad, *, row_target=1024):
    """x2d: [BS, H] f32, w_pad: [H, NLp] bf16, b_pad: [1, NLp] f32 -> [BS, NLp] f32."""
    BS, H = x2d.shape
    NLp = w_pad.shape[1]

    # tile the rows; pad a ragged tail instead of falling back to tile == BS
    n_blocks = max(1, -(-BS // row_target))
    tile = _round_up(-(-BS // n_blocks), 8)
    BSp = n_blocks * tile
    if BSp != BS:
        x2d = jnp.pad(x2d, ((0, BSp - BS), (0, 0)))

    out = pl.pallas_call(
        fused_heads_kernel,
        out_shape=jax.ShapeDtypeStruct((BSp, NLp), jnp.float32),
        grid=(n_blocks,),
        in_specs=[
            pl.BlockSpec((tile, H), lambda i: (i, 0)),
            pl.BlockSpec((H, NLp), lambda i: (0, 0)),
            pl.BlockSpec((1, NLp), lambda i: (0, 0)),
        ],
        out_specs=pl.BlockSpec((tile, NLp), lambda i: (i, 0)),
        compiler_params=pltpu.CompilerParams(
            dimension_semantics=("parallel",),
            vmem_limit_bytes=32 * 1024 * 1024,
        ),
    )(x2d, w_pad, b_pad)
    return out[:BS]


# ----------------------------------------------------------------------------- kernel 2:
# all-4-decoders CRF Viterbi decode (torchcrf semantics) + sentence classifier,
# single invocation.  Lane layout: last axis = D*B (decoders x batch),
# sublane axis = tag dimension L.
def _make_viterbi_sent_kernel(unroll):
    def kernel(emis_ref, mask_ref, trans_ref, start_ref, end_ref,
               pooled_ref, sw_ref, sb_ref,
               tags_ref, sent_ref, hist_ref):
        # emis_ref: [S, L, DB] f32      mask_ref: [S, 1, DB] f32
        # trans_ref: [L_to, L_from, DB] f32   start/end_ref: [L, DB] f32
        # pooled_ref: [B, H] bf16  sw_ref: [H, 2] bf16  sb_ref: [1, 2] f32
        # tags_ref: [S, 1, DB] i32  sent_ref: [B, 1] i32  hist_ref: [S, L, DB] i32
        S, L, DB = emis_ref.shape
        Li = jnp.int32(L)

        # --- sentence classifier: argmax(logits) (softmax dropped: argmax-invariant)
        sent_logits = (
            jnp.dot(pooled_ref[...], sw_ref[...], preferred_element_type=jnp.float32)
            + sb_ref[...]
        )
        sent_ref[...] = _argmax_last(sent_logits)[:, None]

        # --- loop-invariant loads / iotas (hoisted off the serial critical path)
        trans = trans_ref[...]                                    # [L_to, L_from, DB]
        start = start_ref[...]                                    # [L, DB]
        end = end_ref[...]                                        # [L, DB]
        # NOTE: assumes right-padded contiguous masks with length >= 1 (torchcrf).
        seq_ends = jnp.sum(mask_ref[...], axis=0).astype(jnp.int32) - 1   # [1, DB]
        iota_from = lax.broadcasted_iota(jnp.int32, (L, L, DB), 1)
        iota_tag = lax.broadcasted_iota(jnp.int32, (L, DB), 0)

        # --- Viterbi forward (score carried in registers, history in VMEM) ----
        score0 = start + emis_ref[0]                              # [L, DB]

        def fwd(t, score):
            e_t = emis_ref[t]                                     # [L(to), DB]
            m_t = mask_ref[t]                                     # [1, DB]
            # A[to, from, db] = score[from, db] + trans[to, from, db] + emis[t, to, db]
            A = score[None, :, :] + trans + e_t[:, None, :]       # [L, L, DB]
            a_max = jnp.max(A, axis=1)                            # [L, DB] (sublane reduce)
            hist_ref[t - 1] = jnp.min(
                jnp.where(A == a_max[:, None, :], iota_from, Li), axis=1)
            # padded timesteps (mask == 0) leave the score unchanged
            return jnp.where(m_t > 0.0, a_max, score)

        score = lax.fori_loop(1, S, fwd, score0, unroll=unroll)

        final = score + end                                       # [L, DB]
        f_max = jnp.max(final, axis=0, keepdims=True)             # [1, DB]
        best_last = jnp.min(
            jnp.where(final == f_max, iota_tag, Li), axis=0, keepdims=True)  # [1, DB]

        # --- Viterbi backtrack (cur carried in registers) ----------------------
        # hist[S-1] is never written by the forward loop and never selected below;
        # zero it so we never read uninitialised VMEM.
        hist_ref[S - 1] = jnp.zeros((L, DB), jnp.int32)

        def bwd(step, cur):
            t = S - 1 - step
            h_t = hist_ref[t]                                     # [L, DB]
            from_hist = jnp.sum(
                jnp.where(iota_tag == cur, h_t, 0), axis=0, keepdims=True)  # [1, DB]
            at_end = t == seq_ends                                # [1, DB]
            live = t < seq_ends
            cur_new = jnp.where(at_end, best_last,
                                jnp.where(live, from_hist, 0))    # pads decode to 0
            tags_ref[t] = cur_new
            return cur_new

        lax.fori_loop(0, S, bwd, jnp.zeros((1, DB), jnp.int32), unroll=unroll)

    return kernel


def run_viterbi_sent(emis, mask_db, trans_exp, start_exp, end_exp,
                     pooled_bf16, sent_w_bf16, sent_b):
    S, L, DB = emis.shape
    B, H = pooled_bf16.shape
    unroll = True if S <= 32 else 8
    kernel = _make_viterbi_sent_kernel(unroll)

    return pl.pallas_call(
        kernel,
        out_shape=(jax.ShapeDtypeStruct((S, 1, DB), jnp.int32),
                   jax.ShapeDtypeStruct((B, 1), jnp.int32)),
        grid=(1,),
        in_specs=[
            pl.BlockSpec((S, L, DB), lambda i: (0, 0, 0)),
            pl.BlockSpec((S, 1, DB), lambda i: (0, 0, 0)),
            pl.BlockSpec((L, L, DB), lambda i: (0, 0, 0)),
            pl.BlockSpec((L, DB), lambda i: (0, 0)),
            pl.BlockSpec((L, DB), lambda i: (0, 0)),
            pl.BlockSpec((B, H), lambda i: (0, 0)),
            pl.BlockSpec((H, 2), lambda i: (0, 0)),
            pl.BlockSpec((1, 2), lambda i: (0, 0)),
        ],
        out_specs=(
            pl.BlockSpec((S, 1, DB), lambda i: (0, 0, 0)),
            pl.BlockSpec((B, 1), lambda i: (0, 0)),
        ),
        scratch_shapes=[pltpu.VMEM((S, L, DB), jnp.int32)],   # backpointer history
        compiler_params=pltpu.CompilerParams(
            dimension_semantics=("arbitrary",),
            vmem_limit_bytes=32 * 1024 * 1024,
        ),
    )(emis, mask_db, trans_exp, start_exp, end_exp, pooled_bf16, sent_w_bf16, sent_b)


# ----------------------------------------------------------------------------- model
def baseline_forward(input_ids, attn_mask, params):
    """Inference branch of Baseline.forward (labels are None)."""
    B, S = input_ids.shape
    H = params["emb_table"].shape[1]
    n_dec, _, L = params["W"].shape
    DB = n_dec * B

    # --- synthetic encoder (glue) -------------------------------------------
    # TODO(synk): real BERT/PhoBERT transformer encoder not reproduced; synthetic
    # embedding lookup + tanh pooler stands in for (token_embedding, pooled_output).
    token_embedding = params["emb_table"][input_ids]                      # [B, S, H]
    cls = token_embedding[:, 0, :]
    pooled_output = jnp.tanh(cls @ params["pooler_w"] + params["pooler_b"])  # [B, H]

    # dropout layers are identity in eval mode.

    # --- fused 4 label heads (Pallas, bf16 MXU, f32 accumulate) --------------
    NL = n_dec * L
    NLp = _round_up(NL, 128)          # lane-dense (unmasked) output stores
    w_cat = jnp.transpose(params["W"], (1, 0, 2)).reshape(H, NL)
    b_cat = jnp.transpose(params["W_b"], (1, 0, 2)).reshape(1, NL)
    w_pad = jnp.pad(w_cat, ((0, 0), (0, NLp - NL))).astype(jnp.bfloat16)
    b_pad = jnp.pad(b_cat, ((0, 0), (0, NLp - NL)))

    x2d = token_embedding.reshape(B * S, H)                               # f32, cast in-kernel
    logits = run_fused_heads(x2d, w_pad, b_pad)[:, :NL]                   # [B*S, 4L] f32

    msp = logits.reshape(B, S, n_dec, L)                                  # [B, S, 4, L]
    elem_feature = jnp.transpose(msp, (0, 2, 1, 3))                       # [B, 4, S, L]

    # --- CRF Viterbi decode (4 decoders folded, D*B on lanes) + sent. classifier
    # TODO(synk): CRF negative-log-likelihood training loss (labels provided) and
    # the cross-entropy/loss-combination branch are not implemented (inference only).
    emis = jnp.transpose(msp, (1, 3, 2, 0)).reshape(S, L, DB)             # [S, L, D*B]
    maskT = jnp.transpose(attn_mask.astype(jnp.float32), (1, 0))          # [S, B]
    mask_db = jnp.tile(maskT, (1, n_dec)).reshape(S, 1, DB)               # [S, 1, D*B]
    # trans_exp[to, from, d*B+b] = crf_trans[d, from, to]
    trans_exp = jnp.broadcast_to(
        jnp.transpose(params["crf_trans"], (2, 1, 0))[:, :, :, None],
        (L, L, n_dec, B)).reshape(L, L, DB)
    start_exp = jnp.broadcast_to(
        params["crf_start"].reshape(n_dec, L).T[:, :, None], (L, n_dec, B)).reshape(L, DB)
    end_exp = jnp.broadcast_to(
        params["crf_end"].reshape(n_dec, L).T[:, :, None], (L, n_dec, B)).reshape(L, DB)

    tags_s1db, sent_idx = run_viterbi_sent(
        emis, mask_db, trans_exp, start_exp, end_exp,
        pooled_output.astype(jnp.bfloat16),
        params["sent_w"].astype(jnp.bfloat16),
        params["sent_b"])

    tags = jnp.transpose(tags_s1db.reshape(S, n_dec, B), (1, 2, 0))       # [4, B, S]
    elem_output = jnp.transpose(tags[:3], (1, 0, 2))                      # [B, 3, S]
    result_output = tags[3]                                               # [B, S]
    sent_output = sent_idx[:, 0]                                          # [B]

    return token_embedding, elem_feature, elem_output, result_output, sent_output


def init_params(key, vocab, H, L):
    ks = jax.random.split(key, 9)
    return {
        "emb_table": jax.random.normal(ks[0], (vocab, H), jnp.float32) * 0.1,
        "pooler_w":  jax.random.normal(ks[1], (H, H), jnp.float32) * 0.05,
        "pooler_b":  jnp.zeros((H,), jnp.float32),
        "W":         jax.random.normal(ks[2], (4, H, L), jnp.float32) * 0.1,
        "W_b":       jax.random.normal(ks[3], (4, 1, L), jnp.float32) * 0.1,
        "sent_w":    jax.random.normal(ks[4], (H, 2), jnp.float32) * 0.1,
        "sent_b":    jax.random.normal(ks[5], (1, 2), jnp.float32) * 0.1,
        "crf_trans": jax.random.normal(ks[6], (4, L, L), jnp.float32) * 0.1,
        "crf_start": jax.random.normal(ks[7], (4, 1, L), jnp.float32) * 0.1,
        "crf_end":   jax.random.normal(ks[8], (4, 1, L), jnp.float32) * 0.1,
    }


if __name__ == "__main__":
    B, S, H, L, VOCAB = 2, 8, 32, 5, 50

    key = jax.random.PRNGKey(0)
    k_param, k_ids = jax.random.split(key)
    params = init_params(k_param, VOCAB, H, L)

    input_ids = jax.random.randint(k_ids, (B, S), 0, VOCAB, dtype=jnp.int32)
    lengths = jnp.array([S, 5], dtype=jnp.int32)
    attn_mask = (jnp.arange(S)[None, :] < lengths[:, None]).astype(jnp.int32)  # [B, S]

    fwd_fn = jax.jit(baseline_forward)
    outs = fwd_fn(input_ids, attn_mask, params)
    outs = jax.block_until_ready(outs)

    token_embedding, elem_feature, elem_output, result_output, sent_output = outs
    assert token_embedding.shape == (B, S, H)
    assert elem_feature.shape == (B, 4, S, L)
    assert elem_output.shape == (B, 3, S)
    assert result_output.shape == (B, S)
    assert sent_output.shape == (B,)
    assert int(jnp.max(elem_output)) < L and int(jnp.min(elem_output)) >= 0
    assert int(jnp.max(result_output)) < L and int(jnp.min(result_output)) >= 0

    print("KERNEL_OK")
</pallas_src>

<mosaic_0001>
module attributes {stable_mosaic.version = 11 : i64} {
  func.func @fused_heads_kernel(%arg0: i32, %arg1: memref<16x32xf32, #tpu.memory_space<vmem>>, %arg2: memref<32x128xbf16, #tpu.memory_space<vmem>>, %arg3: memref<1x128xf32, #tpu.memory_space<vmem>>, %arg4: memref<16x128xf32, #tpu.memory_space<vmem>>) attributes {dimension_semantics = [#tpu.dimension_semantics<parallel>], iteration_bounds = array<i64: 1>, scalar_prefetch = 0 : i64, scratch_operands = 0 : i64, tpu.core_type = #tpu.core_type<tc>, window_params = [{transform_indices = @transform_0, window_bounds = array<i64: 16, 32>}, {pipeline_mode = #tpu.pipeline_mode<synchronous>, transform_indices = @transform_1, window_bounds = array<i64: 32, 128>}, {pipeline_mode = #tpu.pipeline_mode<synchronous>, transform_indices = @transform_2, window_bounds = array<i64: 1, 128>}, {transform_indices = @transform_3, window_bounds = array<i64: 16, 128>}]} {
    %c0 = arith.constant 0 : index
    %c0_0 = arith.constant 0 : index
    %0 = vector.load %arg1[%c0, %c0_0] : memref<16x32xf32, #tpu.memory_space<vmem>>, vector<16x32xf32>
    %1 = arith.truncf %0 : vector<16x32xf32> to vector<16x32xbf16>
    %c0_1 = arith.constant 0 : index
    %c0_2 = arith.constant 0 : index
    %2 = vector.load %arg2[%c0_1, %c0_2] : memref<32x128xbf16, #tpu.memory_space<vmem>>, vector<32x128xbf16>
    %cst = arith.constant dense<0.000000e+00> : vector<16x128xf32>
    %3 = tpu.matmul %1, %2, %cst {dimension_numbers = #tpu.dot_dimension_numbers<[1], [0], [0], [1], [0, 0, 1, 1], [], []>} : vector<16x32xbf16>, vector<32x128xbf16>, vector<16x128xf32> -> vector<16x128xf32>
    %c0_3 = arith.constant 0 : index
    %c0_4 = arith.constant 0 : index
    %4 = vector.load %arg3[%c0_3, %c0_4] : memref<1x128xf32, #tpu.memory_space<vmem>>, vector<1x128xf32>
    %5 = vector.broadcast %4 : vector<1x128xf32> to vector<16x128xf32>
    %6 = arith.addf %3, %5 : vector<16x128xf32>
    %c0_5 = arith.constant 0 : index
    %c0_6 = arith.constant 0 : index
    %7 = vector.load %arg4[%c0_5, %c0_6] : memref<16x128xf32, #tpu.memory_space<vmem>>, vector<16x128xf32>
    tpu.vector_store %arg4[%c0_5, %c0_6], %6 {strides = array<i32>} : memref<16x128xf32, #tpu.memory_space<vmem>>, vector<16x128xf32>,
    return
  }
  func.func @transform_0(%arg0: i32) -> (i32, i32) {
    %c0_i32 = arith.constant 0 : i32
    %c0_i32_0 = arith.constant 0 : i32
    return %arg0, %c0_i32 : i32, i32
  }
  func.func @transform_1(%arg0: i32) -> (i32, i32) {
    %c0_i32 = arith.constant 0 : i32
    %c0_i32_0 = arith.constant 0 : i32
    %c0_i32_1 = arith.constant 0 : i32
    return %c0_i32, %c0_i32_0 : i32, i32
  }
  func.func @transform_2(%arg0: i32) -> (i32, i32) {
    %c0_i32 = arith.constant 0 : i32
    %c0_i32_0 = arith.constant 0 : i32
    %c0_i32_1 = arith.constant 0 : i32
    return %c0_i32, %c0_i32_0 : i32, i32
  }
  func.func @transform_3(%arg0: i32) -> (i32, i32) {
    %c0_i32 = arith.constant 0 : i32
    %c0_i32_0 = arith.constant 0 : i32
    return %arg0, %c0_i32 : i32, i32
  }
}

module attributes {stable_mosaic.version = 11 : i64} {
  func.func @kernel(%arg0: i32, %arg1: memref<8x5x8xf32, #tpu.memory_space<vmem>>, %arg2: memref<8x1x8xf32, #tpu.memory_space<vmem>>, %arg3: memref<5x5x8xf32, #tpu.memory_space<vmem>>, %arg4: memref<5x8xf32, #tpu.memory_space<vmem>>, %arg5: memref<5x8xf32, #tpu.memory_space<vmem>>, %arg6: memref<2x32xbf16, #tpu.memory_space<vmem>>, %arg7: memref<32x2xbf16, #tpu.memory_space<vmem>>, %arg8: memref<1x2xf32, #tpu.memory_space<vmem>>, %arg9: memref<8x1x8xi32, #tpu.memory_space<vmem>>, %arg10: memref<2x1xi32, #tpu.memory_space<vmem>>, %arg11: memref<8x5x8xi32, #tpu.memory_space<vmem>>) attributes {dimension_semantics = [#tpu.dimension_semantics<arbitrary>], iteration_bounds = array<i64: 1>, scalar_prefetch = 0 : i64, scratch_operands = 1 : i64, tpu.core_type = #tpu.core_type<tc>, window_params = [{pipeline_mode = #tpu.pipeline_mode<synchronous>, transform_indices = @transform_0, window_bounds = array<i64: 8, 5, 8>}, {pipeline_mode = #tpu.pipeline_mode<synchronous>, transform_indices = @transform_1, window_bounds = array<i64: 8, 1, 8>}, {pipeline_mode = #tpu.pipeline_mode<synchronous>, transform_indices = @transform_2, window_bounds = array<i64: 5, 5, 8>}, {pipeline_mode = #tpu.pipeline_mode<synchronous>, transform_indices = @transform_3, window_bounds = array<i64: 5, 8>}, {pipeline_mode = #tpu.pipeline_mode<synchronous>, transform_indices = @transform_4, window_bounds = array<i64: 5, 8>}, {pipeline_mode = #tpu.pipeline_mode<synchronous>, transform_indices = @transform_5, window_bounds = array<i64: 2, 32>}, {pipeline_mode = #tpu.pipeline_mode<synchronous>, transform_indices = @transform_6, window_bounds = array<i64: 32, 2>}, {pipeline_mode = #tpu.pipeline_mode<synchronous>, transform_indices = @transform_7, window_bounds = array<i64: 1, 2>}, {pipeline_mode = #tpu.pipeline_mode<synchronous>, transform_indices = @transform_8, window_bounds = array<i64: 8, 1, 8>}, {pipeline_mode = #tpu.pipeline_mode<synchronous>, transform_indices = @transform_9, window_bounds = array<i64: 2, 1>}]} {
    %c0 = arith.constant 0 : index
    %c0_0 = arith.constant 0 : index
    %0 = vector.load %arg6[%c0, %c0_0] : memref<2x32xbf16, #tpu.memory_space<vmem>>, vector<2x32xbf16>
    %c0_1 = arith.constant 0 : index
    %c0_2 = arith.constant 0 : index
    %1 = vector.load %arg7[%c0_1, %c0_2] : memref<32x2xbf16, #tpu.memory_space<vmem>>, vector<32x2xbf16>
    %cst = arith.constant dense<0.000000e+00> : vector<2x2xf32>
    %2 = tpu.matmul %0, %1, %cst {dimension_numbers = #tpu.dot_dimension_numbers<[1], [0], [0], [1], [0, 0, 1, 1], [], []>} : vector<2x32xbf16>, vector<32x2xbf16>, vector<2x2xf32> -> vector<2x2xf32>
    %c0_3 = arith.constant 0 : index
    %c0_4 = arith.constant 0 : index
    %3 = vector.load %arg8[%c0_3, %c0_4] : memref<1x2xf32, #tpu.memory_space<vmem>>, vector<1x2xf32>
    %4 = vector.broadcast %3 : vector<1x2xf32> to vector<2x2xf32>
    %5 = arith.addf %2, %4 : vector<2x2xf32>
    %6 = tpu.iota {dimensions = array<i32: 1>} : vector<2x2xi32>
    %cst_5 = arith.constant dense<0xFF800000> : vector<2xf32>
    %7 = vector.multi_reduction <maximumf>, %5, %cst_5 [1] : vector<2x2xf32> to vector<2xf32>
    %8 = vector.shape_cast %7 : vector<2xf32> to vector<2x1xf32>
    %9 = vector.broadcast %8 : vector<2x1xf32> to vector<2x2xf32>
    %10 = arith.cmpf oeq, %5, %9 : vector<2x2xf32>
    %c2_i32 = arith.constant 2 : i32
    %11 = vector.broadcast %c2_i32 : i32 to vector<2x2xi32>
    %12 = arith.select %10, %6, %11 : vector<2x2xi1>, vector<2x2xi32>
    %cst_6 = arith.constant dense<2147483647> : vector<2xi32>
    %13 = vector.multi_reduction <minsi>, %12, %cst_6 [1] : vector<2x2xi32> to vector<2xi32>
    %14 = vector.shape_cast %13 : vector<2xi32> to vector<2x1xi32>
    %c0_7 = arith.constant 0 : index
    %c0_8 = arith.constant 0 : index
    %15 = vector.load %arg10[%c0_7, %c0_8] : memref<2x1xi32, #tpu.memory_space<vmem>>, vector<2x1xi32>
    tpu.vector_store %arg10[%c0_7, %c0_8], %14 {strides = array<i32>} : memref<2x1xi32, #tpu.memory_space<vmem>>, vector<2x1xi32>,
    %c0_9 = arith.constant 0 : index
    %c0_10 = arith.constant 0 : index
    %c0_11 = arith.constant 0 : index
    %16 = vector.load %arg3[%c0_9, %c0_10, %c0_11] : memref<5x5x8xf32, #tpu.memory_space<vmem>>, vector<5x5x8xf32>
    %c0_12 = arith.constant 0 : index
    %c0_13 = arith.constant 0 : index
    %17 = vector.load %arg4[%c0_12, %c0_13] : memref<5x8xf32, #tpu.memory_space<vmem>>, vector<5x8xf32>
    %c0_14 = arith.constant 0 : index
    %c0_15 = arith.constant 0 : index
    %18 = vector.load %arg5[%c0_14, %c0_15] : memref<5x8xf32, #tpu.memory_space<vmem>>, vector<5x8xf32>
    %c0_16 = arith.constant 0 : index
    %c0_17 = arith.constant 0 : index
    %c0_18 = arith.constant 0 : index
    %19 = vector.load %arg2[%c0_16, %c0_17, %c0_18] : memref<8x1x8xf32, #tpu.memory_space<vmem>>, vector<8x1x8xf32>
    %cst_19 = arith.constant dense<0.000000e+00> : vector<1x8xf32>
    %20 = vector.multi_reduction <add>, %19, %cst_19 [0] : vector<8x1x8xf32> to vector<1x8xf32>
    %21 = arith.fptosi %20 : vector<1x8xf32> to vector<1x8xi32>
    %c1_i32 = arith.constant 1 : i32
    %22 = vector.broadcast %c1_i32 : i32 to vector<1x8xi32>
    %23 = arith.subi %21, %22 : vector<1x8xi32>
    %24 = tpu.iota {dimensions = array<i32: 1>} : vector<5x5x8xi32>
    %25 = tpu.iota {dimensions = array<i32: 0>} : vector<5x8xi32>
    %c0_20 = arith.constant 0 : index
    %c0_21 = arith.constant 0 : index
    %c0_22 = arith.constant 0 : index
    %26 = vector.load %arg1[%c0_20, %c0_21, %c0_22] : memref<8x5x8xf32, #tpu.memory_space<vmem>>, vector<1x5x8xf32>
    %27 = vector.shape_cast %26 : vector<1x5x8xf32> to vector<5x8xf32>
    %28 = arith.addf %17, %27 : vector<5x8xf32>
    %c5_i32 = arith.constant 5 : i32
    %c1_i32_23 = arith.constant 1 : i32
    %29 = arith.index_cast %c1_i32_23 : i32 to index
    %c0_24 = arith.constant 0 : index
    %c0_25 = arith.constant 0 : index
    %30 = vector.load %arg1[%29, %c0_24, %c0_25] : memref<8x5x8xf32, #tpu.memory_space<vmem>>, vector<1x5x8xf32>
    %31 = vector.shape_cast %30 : vector<1x5x8xf32> to vector<5x8xf32>
    %32 = arith.index_cast %c1_i32_23 : i32 to index
    %c0_26 = arith.constant 0 : index
    %c0_27 = arith.constant 0 : index
    %33 = vector.load %arg2[%32, %c0_26, %c0_27] : memref<8x1x8xf32, #tpu.memory_space<vmem>>, vector<1x1x8xf32>
    %34 = vector.shape_cast %33 : vector<1x1x8xf32> to vector<1x8xf32>
    %35 = vector.shape_cast %28 : vector<5x8xf32> to vector<1x5x8xf32>
    %36 = vector.broadcast %35 : vector<1x5x8xf32> to vector<5x5x8xf32>
    %37 = arith.addf %36, %16 : vector<5x5x8xf32>
    %38 = vector.shape_cast %31 : vector<5x8xf32> to vector<5x1x8xf32>
    %39 = vector.broadcast %38 : vector<5x1x8xf32> to vector<5x5x8xf32>
    %40 = arith.addf %37, %39 : vector<5x5x8xf32>
    %cst_28 = arith.constant dense<0xFF800000> : vector<5x8xf32>
    %41 = vector.multi_reduction <maximumf>, %40, %cst_28 [1] : vector<5x5x8xf32> to vector<5x8xf32>
    %42 = vector.shape_cast %41 : vector<5x8xf32> to vector<5x1x8xf32>
    %43 = vector.broadcast %42 : vector<5x1x8xf32> to vector<5x5x8xf32>
    %44 = arith.cmpf oeq, %40, %43 : vector<5x5x8xf32>
    %45 = vector.broadcast %c5_i32 : i32 to vector<5x5x8xi32>
    %46 = arith.select %44, %24, %45 : vector<5x5x8xi1>, vector<5x5x8xi32>
    %cst_29 = arith.constant dense<2147483647> : vector<5x8xi32>
    %47 = vector.multi_reduction <minsi>, %46, %cst_29 [1] : vector<5x5x8xi32> to vector<5x8xi32>
    %c1_i32_30 = arith.constant 1 : i32
    %48 = arith.subi %c1_i32_23, %c1_i32_30 : i32
    %49 = arith.index_cast %48 : i32 to index
    %c0_31 = arith.constant 0 : index
    %c0_32 = arith.constant 0 : index
    %50 = vector.load %arg11[%49, %c0_31, %c0_32] : memref<8x5x8xi32, #tpu.memory_space<vmem>>, vector<1x5x8xi32>
    %51 = vector.shape_cast %50 : vector<1x5x8xi32> to vector<5x8xi32>
    %52 = vector.shape_cast %47 : vector<5x8xi32> to vector<1x5x8xi32>
    tpu.vector_store %arg11[%49, %c0_31, %c0_32], %52 {strides = array<i32>} : memref<8x5x8xi32, #tpu.memory_space<vmem>>, vector<1x5x8xi32>,
    %cst_33 = arith.constant 0.000000e+00 : f32
    %53 = vector.broadcast %cst_33 : f32 to vector<1x8xf32>
    %54 = arith.cmpf ogt, %34, %53 : vector<1x8xf32>
    %55 = vector.shape_cast %54 : vector<1x8xi1> to vector<1x8xi1>
    %56 = vector.broadcast %55 : vector<1x8xi1> to vector<5x8xi1>
    %57 = arith.select %56, %41, %28 : vector<5x8xi1>, vector<5x8xf32>
    %c2_i32_34 = arith.constant 2 : i32
    %58 = arith.index_cast %c2_i32_34 : i32 to index
    %c0_35 = arith.constant 0 : index
    %c0_36 = arith.constant 0 : index
    %59 = vector.load %arg1[%58, %c0_35, %c0_36] : memref<8x5x8xf32, #tpu.memory_space<vmem>>, vector<1x5x8xf32>
    %60 = vector.shape_cast %59 : vector<1x5x8xf32> to vector<5x8xf32>
    %61 = arith.index_cast %c2_i32_34 : i32 to index
    %c0_37 = arith.constant 0 : index
    %c0_38 = arith.constant 0 : index
    %62 = vector.load %arg2[%61, %c0_37, %c0_38] : memref<8x1x8xf32, #tpu.memory_space<vmem>>, vector<1x1x8xf32>
    %63 = vector.shape_cast %62 : vector<1x1x8xf32> to vector<1x8xf32>
    %64 = vector.shape_cast %57 : vector<5x8xf32> to vector<1x5x8xf32>
    %65 = vector.broadcast %64 : vector<1x5x8xf32> to vector<5x5x8xf32>
    %66 = arith.addf %65, %16 : vector<5x5x8xf32>
    %67 = vector.shape_cast %60 : vector<5x8xf32> to vector<5x1x8xf32>
    %68 = vector.broadcast %67 : vector<5x1x8xf32> to vector<5x5x8xf32>
    %69 = arith.addf %66, %68 : vector<5x5x8xf32>
    %cst_39 = arith.constant dense<0xFF800000> : vector<5x8xf32>
    %70 = vector.multi_reduction <maximumf>, %69, %cst_39 [1] : vector<5x5x8xf32> to vector<5x8xf32>
    %71 = vector.shape_cast %70 : vector<5x8xf32> to vector<5x1x8xf32>
    %72 = vector.broadcast %71 : vector<5x1x8xf32> to vector<5x5x8xf32>
    %73 = arith.cmpf oeq, %69, %72 : vector<5x5x8xf32>
    %74 = vector.broadcast %c5_i32 : i32 to vector<5x5x8xi32>
    %75 = arith.select %73, %24, %74 : vector<5x5x8xi1>, vector<5x5x8xi32>
    %cst_40 = arith.constant dense<2147483647> : vector<5x8xi32>
    %76 = vector.multi_reduction <minsi>, %75, %cst_40 [1] : vector<5x5x8xi32> to vector<5x8xi32>
    %c1_i32_41 = arith.constant 1 : i32
    %77 = arith.subi %c2_i32_34, %c1_i32_41 : i32
    %78 = arith.index_cast %77 : i32 to index
    %c0_42 = arith.constant 0 : index
    %c0_43 = arith.constant 0 : index
    %79 = vector.load %arg11[%78, %c0_42, %c0_43] : memref<8x5x8xi32, #tpu.memory_space<vmem>>, vector<1x5x8xi32>
    %80 = vector.shape_cast %79 : vector<1x5x8xi32> to vector<5x8xi32>
    %81 = vector.shape_cast %76 : vector<5x8xi32> to vector<1x5x8xi32>
    tpu.vector_store %arg11[%78, %c0_42, %c0_43], %81 {strides = array<i32>} : memref<8x5x8xi32, #tpu.memory_space<vmem>>, vector<1x5x8xi32>,
    %cst_44 = arith.constant 0.000000e+00 : f32
    %82 = vector.broadcast %cst_44 : f32 to vector<1x8xf32>
    %83 = arith.cmpf ogt, %63, %82 : vector<1x8xf32>
    %84 = vector.shape_cast %83 : vector<1x8xi1> to vector<1x8xi1>
    %85 = vector.broadcast %84 : vector<1x8xi1> to vector<5x8xi1>
    %86 = arith.select %85, %70, %57 : vector<5x8xi1>, vector<5x8xf32>
    %c3_i32 = arith.constant 3 : i32
    %87 = arith.index_cast %c3_i32 : i32 to index
    %c0_45 = arith.constant 0 : index
    %c0_46 = arith.constant 0 : index
    %88 = vector.load %arg1[%87, %c0_45, %c0_46] : memref<8x5x8xf32, #tpu.memory_space<vmem>>, vector<1x5x8xf32>
    %89 = vector.shape_cast %88 : vector<1x5x8xf32> to vector<5x8xf32>
    %90 = arith.index_cast %c3_i32 : i32 to index
    %c0_47 = arith.constant 0 : index
    %c0_48 = arith.constant 0 : index
    %91 = vector.load %arg2[%90, %c0_47, %c0_48] : memref<8x1x8xf32, #tpu.memory_space<vmem>>, vector<1x1x8xf32>
    %92 = vector.shape_cast %91 : vector<1x1x8xf32> to vector<1x8xf32>
    %93 = vector.shape_cast %86 : vector<5x8xf32> to vector<1x5x8xf32>
    %94 = vector.broadcast %93 : vector<1x5x8xf32> to vector<5x5x8xf32>
    %95 = arith.addf %94, %16 : vector<5x5x8xf32>
    %96 = vector.shape_cast %89 : vector<5x8xf32> to vector<5x1x8xf32>
    %97 = vector.broadcast %96 : vector<5x1x8xf32> to vector<5x5x8xf32>
    %98 = arith.addf %95, %97 : vector<5x5x8xf32>
    %cst_49 = arith.constant dense<0xFF800000> : vector<5x8xf32>
    %99 = vector.multi_reduction <maximumf>, %98, %cst_49 [1] : vector<5x5x8xf32> to vector<5x8xf32>
    %100 = vector.shape_cast %99 : vector<5x8xf32> to vector<5x1x8xf32>
    %101 = vector.broadcast %100 : vector<5x1x8xf32> to vector<5x5x8xf32>
    %102 = arith.cmpf oeq, %98, %101 : vector<5x5x8xf32>
    %103 = vector.broadcast %c5_i32 : i32 to vector<5x5x8xi32>
    %104 = arith.select %102, %24, %103 : vector<5x5x8xi1>, vector<5x5x8xi32>
    %cst_50 = arith.constant dense<2147483647> : vector<5x8xi32>
    %105 = vector.multi_reduction <minsi>, %104, %cst_50 [1] : vector<5x5x8xi32> to vector<5x8xi32>
    %c1_i32_51 = arith.constant 1 : i32
    %106 = arith.subi %c3_i32, %c1_i32_51 : i32
    %107 = arith.index_cast %106 : i32 to index
    %c0_52 = arith.constant 0 : index
    %c0_53 = arith.constant 0 : index
    %108 = vector.load %arg11[%107, %c0_52, %c0_53] : memref<8x5x8xi32, #tpu.memory_space<vmem>>, vector<1x5x8xi32>
    %109 = vector.shape_cast %108 : vector<1x5x8xi32> to vector<5x8xi32>
    %110 = vector.shape_cast %105 : vector<5x8xi32> to vector<1x5x8xi32>
    tpu.vector_store %arg11[%107, %c0_52, %c0_53], %110 {strides = array<i32>} : memref<8x5x8xi32, #tpu.memory_space<vmem>>, vector<1x5x8xi32>,
    %cst_54 = arith.constant 0.000000e+00 : f32
    %111 = vector.broadcast %cst_54 : f32 to vector<1x8xf32>
    %112 = arith.cmpf ogt, %92, %111 : vector<1x8xf32>
    %113 = vector.shape_cast %112 : vector<1x8xi1> to vector<1x8xi1>
    %114 = vector.broadcast %113 : vector<1x8xi1> to vector<5x8xi1>
    %115 = arith.select %114, %99, %86 : vector<5x8xi1>, vector<5x8xf32>
    %c4_i32 = arith.constant 4 : i32
    %116 = arith.index_cast %c4_i32 : i32 to index
    %c0_55 = arith.constant 0 : index
    %c0_56 = arith.constant 0 : index
    %117 = vector.load %arg1[%116, %c0_55, %c0_56] : memref<8x5x8xf32, #tpu.memory_space<vmem>>, vector<1x5x8xf32>
    %118 = vector.shape_cast %117 : vector<1x5x8xf32> to vector<5x8xf32>
    %119 = arith.index_cast %c4_i32 : i32 to index
    %c0_57 = arith.constant 0 : index
    %c0_58 = arith.constant 0 : index
    %120 = vector.load %arg2[%119, %c0_57, %c0_58] : memref<8x1x8xf32, #tpu.memory_space<vmem>>, vector<1x1x8xf32>
    %121 = vector.shape_cast %120 : vector<1x1x8xf32> to vector<1x8xf32>
    %122 = vector.shape_cast %115 : vector<5x8xf32> to vector<1x5x8xf32>
    %123 = vector.broadcast %122 : vector<1x5x8xf32> to vector<5x5x8xf32>
    %124 = arith.addf %123, %16 : vector<5x5x8xf32>
    %125 = vector.shape_cast %118 : vector<5x8xf32> to vector<5x1x8xf32>
    %126 = vector.broadcast %125 : vector<5x1x8xf32> to vector<5x5x8xf32>
    %127 = arith.addf %124, %126 : vector<5x5x8xf32>
    %cst_59 = arith.constant dense<0xFF800000> : vector<5x8xf32>
    %128 = vector.multi_reduction <maximumf>, %127, %cst_59 [1] : vector<5x5x8xf32> to vector<5x8xf32>
    %129 = vector.shape_cast %128 : vector<5x8xf32> to vector<5x1x8xf32>
    %130 = vector.broadcast %129 : vector<5x1x8xf32> to vector<5x5x8xf32>
    %131 = arith.cmpf oeq, %127, %130 : vector<5x5x8xf32>
    %132 = vector.broadcast %c5_i32 : i32 to vector<5x5x8xi32>
    %133 = arith.select %131, %24, %132 : vector<5x5x8xi1>, vector<5x5x8xi32>
    %cst_60 = arith.constant dense<2147483647> : vector<5x8xi32>
    %134 = vector.multi_reduction <minsi>, %133, %cst_60 [1] : vector<5x5x8xi32> to vector<5x8xi32>
    %c1_i32_61 = arith.constant 1 : i32
    %135 = arith.subi %c4_i32, %c1_i32_61 : i32
    %136 = arith.index_cast %135 : i32 to index
    %c0_62 = arith.constant 0 : index
    %c0_63 = arith.constant 0 : index
    %137 = vector.load %arg11[%136, %c0_62, %c0_63] : memref<8x5x8xi32, #tpu.memory_space<vmem>>, vector<1x5x8xi32>
    %138 = vector.shape_cast %137 : vector<1x5x8xi32> to vector<5x8xi32>
    %139 = vector.shape_cast %134 : vector<5x8xi32> to vector<1x5x8xi32>
    tpu.vector_store %arg11[%136, %c0_62, %c0_63], %139 {strides = array<i32>} : memref<8x5x8xi32, #tpu.memory_space<vmem>>, vector<1x5x8xi32>,
    %cst_64 = arith.constant 0.000000e+00 : f32
    %140 = vector.broadcast %cst_64 : f32 to vector<1x8xf32>
    %141 = arith.cmpf ogt, %121, %140 : vector<1x8xf32>
    %142 = vector.shape_cast %141 : vector<1x8xi1> to vector<1x8xi1>
    %143 = vector.broadcast %142 : vector<1x8xi1> to vector<5x8xi1>
    %144 = arith.select %143, %128, %115 : vector<5x8xi1>, vector<5x8xf32>
    %c5_i32_65 = arith.constant 5 : i32
    %145 = arith.index_cast %c5_i32_65 : i32 to index
    %c0_66 = arith.constant 0 : index
    %c0_67 = arith.constant 0 : index
    %146 = vector.load %arg1[%145, %c0_66, %c0_67] : memref<8x5x8xf32, #tpu.memory_space<vmem>>, vector<1x5x8xf32>
    %147 = vector.shape_cast %146 : vector<1x5x8xf32> to vector<5x8xf32>
    %148 = arith.index_cast %c5_i32_65 : i32 to index
    %c0_68 = arith.constant 0 : index
    %c0_69 = arith.constant 0 : index
    %149 = vector.load %arg2[%148, %c0_68, %c0_69] : memref<8x1x8xf32, #tpu.memory_space<vmem>>, vector<1x1x8xf32>
    %150 = vector.shape_cast %149 : vector<1x1x8xf32> to vector<1x8xf32>
    %151 = vector.shape_cast %144 : vector<5x8xf32> to vector<1x5x8xf32>
    %152 = vector.broadcast %151 : vector<1x5x8xf32> to vector<5x5x8xf32>
    %153 = arith.addf %152, %16 : vector<5x5x8xf32>
    %154 = vector.shape_cast %147 : vector<5x8xf32> to vector<5x1x8xf32>
    %155 = vector.broadcast %154 : vector<5x1x8xf32> to vector<5x5x8xf32>
    %156 = arith.addf %153, %155 : vector<5x5x8xf32>
    %cst_70 = arith.constant dense<0xFF800000> : vector<5x8xf32>
    %157 = vector.multi_reduction <maximumf>, %156, %cst_70 [1] : vector<5x5x8xf32> to vector<5x8xf32>
    %158 = vector.shape_cast %157 : vector<5x8xf32> to vector<5x1x8xf32>
    %159 = vector.broadcast %158 : vector<5x1x8xf32> to vector<5x5x8xf32>
    %160 = arith.cmpf oeq, %156, %159 : vector<5x5x8xf32>
    %161 = vector.broadcast %c5_i32 : i32 to vector<5x5x8xi32>
    %162 = arith.select %160, %24, %161 : vector<5x5x8xi1>, vector<5x5x8xi32>
    %cst_71 = arith.constant dense<2147483647> : vector<5x8xi32>
    %163 = vector.multi_reduction <minsi>, %162, %cst_71 [1] : vector<5x5x8xi32> to vector<5x8xi32>
    %c1_i32_72 = arith.constant 1 : i32
    %164 = arith.subi %c5_i32_65, %c1_i32_72 : i32
    %165 = arith.index_cast %164 : i32 to index
    %c0_73 = arith.constant 0 : index
    %c0_74 = arith.constant 0 : index
    %166 = vector.load %arg11[%165, %c0_73, %c0_74] : memref<8x5x8xi32, #tpu.memory_space<vmem>>, vector<1x5x8xi32>
    %167 = vector.shape_cast %166 : vector<1x5x8xi32> to vector<5x8xi32>
    %168 = vector.shape_cast %163 : vector<5x8xi32> to vector<1x5x8xi32>
    tpu.vector_store %arg11[%165, %c0_73, %c0_74], %168 {strides = array<i32>} : memref<8x5x8xi32, #tpu.memory_space<vmem>>, vector<1x5x8xi32>,
    %cst_75 = arith.constant 0.000000e+00 : f32
    %169 = vector.broadcast %cst_75 : f32 to vector<1x8xf32>
    %170 = arith.cmpf ogt, %150, %169 : vector<1x8xf32>
    %171 = vector.shape_cast %170 : vector<1x8xi1> to vector<1x8xi1>
    %172 = vector.broadcast %171 : vector<1x8xi1> to vector<5x8xi1>
    %173 = arith.select %172, %157, %144 : vector<5x8xi1>, vector<5x8xf32>
    %c6_i32 = arith.constant 6 : i32
    %174 = arith.index_cast %c6_i32 : i32 to index
    %c0_76 = arith.constant 0 : index
    %c0_77 = arith.constant 0 : index
    %175 = vector.load %arg1[%174, %c0_76, %c0_77] : memref<8x5x8xf32, #tpu.memory_space<vmem>>, vector<1x5x8xf32>
    %176 = vector.shape_cast %175 : vector<1x5x8xf32> to vector<5x8xf32>
    %177 = arith.index_cast %c6_i32 : i32 to index
    %c0_78 = arith.constant 0 : index
    %c0_79 = arith.constant 0 : index
    %178 = vector.load %arg2[%177, %c0_78, %c0_79] : memref<8x1x8xf32, #tpu.memory_space<vmem>>, vector<1x1x8xf32>
    %179 = vector.shape_cast %178 : vector<1x1x8xf32> to vector<1x8xf32>
    %180 = vector.shape_cast %173 : vector<5x8xf32> to vector<1x5x8xf32>
    %181 = vector.broadcast %180 : vector<1x5x8xf32> to vector<5x5x8xf32>
    %182 = arith.addf %181, %16 : vector<5x5x8xf32>
    %183 = vector.shape_cast %176 : vector<5x8xf32> to vector<5x1x8xf32>
    %184 = vector.broadcast %183 : vector<5x1x8xf32> to vector<5x5x8xf32>
    %185 = arith.addf %182, %184 : vector<5x5x8xf32>
    %cst_80 = arith.constant dense<0xFF800000> : vector<5x8xf32>
    %186 = vector.multi_reduction <maximumf>, %185, %cst_80 [1] : vector<5x5x8xf32> to vector<5x8xf32>
    %187 = vector.shape_cast %186 : vector<5x8xf32> to vector<5x1x8xf32>
    %188 = vector.broadcast %187 : vector<5x1x8xf32> to vector<5x5x8xf32>
    %189 = arith.cmpf oeq, %185, %188 : vector<5x5x8xf32>
    %190 = vector.broadcast %c5_i32 : i32 to vector<5x5x8xi32>
    %191 = arith.select %189, %24, %190 : vector<5x5x8xi1>, vector<5x5x8xi32>
    %cst_81 = arith.constant dense<2147483647> : vector<5x8xi32>
    %192 = vector.multi_reduction <minsi>, %191, %cst_81 [1] : vector<5x5x8xi32> to vector<5x8xi32>
    %c1_i32_82 = arith.constant 1 : i32
    %193 = arith.subi %c6_i32, %c1_i32_82 : i32
    %194 = arith.index_cast %193 : i32 to index
    %c0_83 = arith.constant 0 : index
    %c0_84 = arith.constant 0 : index
    %195 = vector.load %arg11[%194, %c0_83, %c0_84] : memref<8x5x8xi32, #tpu.memory_space<vmem>>, vector<1x5x8xi32>
    %196 = vector.shape_cast %195 : vector<1x5x8xi32> to vector<5x8xi32>
    %197 = vector.shape_cast %192 : vector<5x8xi32> to vector<1x5x8xi32>
    tpu.vector_store %arg11[%194, %c0_83, %c0_84], %197 {strides = array<i32>} : memref<8x5x8xi32, #tpu.memory_space<vmem>>, vector<1x5x8xi32>,
    %cst_85 = arith.constant 0.000000e+00 : f32
    %198 = vector.broadcast %cst_85 : f32 to vector<1x8xf32>
    %199 = arith.cmpf ogt, %179, %198 : vector<1x8xf32>
    %200 = vector.shape_cast %199 : vector<1x8xi1> to vector<1x8xi1>
    %201 = vector.broadcast %200 : vector<1x8xi1> to vector<5x8xi1>
    %202 = arith.select %201, %186, %173 : vector<5x8xi1>, vector<5x8xf32>
    %c7_i32 = arith.constant 7 : i32
    %203 = arith.index_cast %c7_i32 : i32 to index
    %c0_86 = arith.constant 0 : index
    %c0_87 = arith.constant 0 : index
    %204 = vector.load %arg1[%203, %c0_86, %c0_87] : memref<8x5x8xf32, #tpu.memory_space<vmem>>, vector<1x5x8xf32>
    %205 = vector.shape_cast %204 : vector<1x5x8xf32> to vector<5x8xf32>
    %206 = arith.index_cast %c7_i32 : i32 to index
    %c0_88 = arith.constant 0 : index
    %c0_89 = arith.constant 0 : index
    %207 = vector.load %arg2[%206, %c0_88, %c0_89] : memref<8x1x8xf32, #tpu.memory_space<vmem>>, vector<1x1x8xf32>
    %208 = vector.shape_cast %207 : vector<1x1x8xf32> to vector<1x8xf32>
    %209 = vector.shape_cast %202 : vector<5x8xf32> to vector<1x5x8xf32>
    %210 = vector.broadcast %209 : vector<1x5x8xf32> to vector<5x5x8xf32>
    %211 = arith.addf %210, %16 : vector<5x5x8xf32>
    %212 = vector.shape_cast %205 : vector<5x8xf32> to vector<5x1x8xf32>
    %213 = vector.broadcast %212 : vector<5x1x8xf32> to vector<5x5x8xf32>
    %214 = arith.addf %211, %213 : vector<5x5x8xf32>
    %cst_90 = arith.constant dense<0xFF800000> : vector<5x8xf32>
    %215 = vector.multi_reduction <maximumf>, %214, %cst_90 [1] : vector<5x5x8xf32> to vector<5x8xf32>
    %216 = vector.shape_cast %215 : vector<5x8xf32> to vector<5x1x8xf32>
    %217 = vector.broadcast %216 : vector<5x1x8xf32> to vector<5x5x8xf32>
    %218 = arith.cmpf oeq, %214, %217 : vector<5x5x8xf32>
    %219 = vector.broadcast %c5_i32 : i32 to vector<5x5x8xi32>
    %220 = arith.select %218, %24, %219 : vector<5x5x8xi1>, vector<5x5x8xi32>
    %cst_91 = arith.constant dense<2147483647> : vector<5x8xi32>
    %221 = vector.multi_reduction <minsi>, %220, %cst_91 [1] : vector<5x5x8xi32> to vector<5x8xi32>
    %c1_i32_92 = arith.constant 1 : i32
    %222 = arith.subi %c7_i32, %c1_i32_92 : i32
    %223 = arith.index_cast %222 : i32 to index
    %c0_93 = arith.constant 0 : index
    %c0_94 = arith.constant 0 : index
    %224 = vector.load %arg11[%223, %c0_93, %c0_94] : memref<8x5x8xi32, #tpu.memory_space<vmem>>, vector<1x5x8xi32>
    %225 = vector.shape_cast %224 : vector<1x5x8xi32> to vector<5x8xi32>
    %226 = vector.shape_cast %221 : vector<5x8xi32> to vector<1x5x8xi32>
    tpu.vector_store %arg11[%223, %c0_93, %c0_94], %226 {strides = array<i32>} : memref<8x5x8xi32, #tpu.memory_space<vmem>>, vector<1x5x8xi32>,
    %cst_95 = arith.constant 0.000000e+00 : f32
    %227 = vector.broadcast %cst_95 : f32 to vector<1x8xf32>
    %228 = arith.cmpf ogt, %208, %227 : vector<1x8xf32>
    %229 = vector.shape_cast %228 : vector<1x8xi1> to vector<1x8xi1>
    %230 = vector.broadcast %229 : vector<1x8xi1> to vector<5x8xi1>
    %231 = arith.select %230, %215, %202 : vector<5x8xi1>, vector<5x8xf32>
    %c7_i32_96 = arith.constant 7 : i32
    %232 = arith.addf %231, %18 : vector<5x8xf32>
    %cst_97 = arith.constant dense<0xFF800000> : vector<8xf32>
    %233 = vector.multi_reduction <maximumf>, %232, %cst_97 [0] : vector<5x8xf32> to vector<8xf32>
    %234 = vector.shape_cast %233 : vector<8xf32> to vector<1x8xf32>
    %235 = vector.broadcast %234 : vector<1x8xf32> to vector<5x8xf32>
    %236 = arith.cmpf oeq, %232, %235 : vector<5x8xf32>
    %c5_i32_98 = arith.constant 5 : i32
    %237 = vector.broadcast %c5_i32_98 : i32 to vector<5x8xi32>
    %238 = arith.select %236, %25, %237 : vector<5x8xi1>, vector<5x8xi32>
    %cst_99 = arith.constant dense<2147483647> : vector<8xi32>
    %239 = vector.multi_reduction <minsi>, %238, %cst_99 [0] : vector<5x8xi32> to vector<8xi32>
    %240 = vector.shape_cast %239 : vector<8xi32> to vector<1x8xi32>
    %c0_i32 = arith.constant 0 : i32
    %241 = vector.broadcast %c0_i32 : i32 to vector<5x8xi32>
    %c7 = arith.constant 7 : index
    %c0_100 = arith.constant 0 : index
    %c0_101 = arith.constant 0 : index
    %242 = vector.load %arg11[%c7, %c0_100, %c0_101] : memref<8x5x8xi32, #tpu.memory_space<vmem>>, vector<1x5x8xi32>
    %243 = vector.shape_cast %242 : vector<1x5x8xi32> to vector<5x8xi32>
    %244 = vector.shape_cast %241 : vector<5x8xi32> to vector<1x5x8xi32>
    tpu.vector_store %arg11[%c7, %c0_100, %c0_101], %244 {strides = array<i32>} : memref<8x5x8xi32, #tpu.memory_space<vmem>>, vector<1x5x8xi32>,
    %c0_i32_102 = arith.constant 0 : i32
    %245 = vector.broadcast %c0_i32_102 : i32 to vector<1x8xi32>
    %c0_i32_103 = arith.constant 0 : i32
    %c7_i32_104 = arith.constant 7 : i32
    %246 = arith.subi %c7_i32_104, %c0_i32_103 : i32
    %247 = arith.index_cast %246 : i32 to index
    %c0_105 = arith.constant 0 : index
    %c0_106 = arith.constant 0 : index
    %248 = vector.load %arg11[%247, %c0_105, %c0_106] : memref<8x5x8xi32, #tpu.memory_space<vmem>>, vector<1x5x8xi32>
    %249 = vector.shape_cast %248 : vector<1x5x8xi32> to vector<5x8xi32>
    %250 = vector.broadcast %245 : vector<1x8xi32> to vector<5x8xi32>
    %251 = arith.cmpi eq, %25, %250 : vector<5x8xi32>
    %c0_i32_107 = arith.constant 0 : i32
    %252 = vector.broadcast %c0_i32_107 : i32 to vector<5x8xi32>
    %253 = arith.select %251, %249, %252 : vector<5x8xi1>, vector<5x8xi32>
    %cst_108 = arith.constant dense<0> : vector<8xi32>
    %254 = vector.multi_reduction <add>, %253, %cst_108 [0] : vector<5x8xi32> to vector<8xi32>
    %255 = vector.shape_cast %254 : vector<8xi32> to vector<1x8xi32>
    %256 = vector.broadcast %246 : i32 to vector<1x8xi32>
    %257 = arith.cmpi eq, %256, %23 : vector<1x8xi32>
    %258 = vector.broadcast %246 : i32 to vector<1x8xi32>
    %259 = arith.cmpi slt, %258, %23 : vector<1x8xi32>
    %c0_i32_109 = arith.constant 0 : i32
    %260 = vector.broadcast %c0_i32_109 : i32 to vector<1x8xi32>
    %261 = arith.select %259, %255, %260 : vector<1x8xi1>, vector<1x8xi32>
    %262 = arith.select %257, %240, %261 : vector<1x8xi1>, vector<1x8xi32>
    %263 = arith.index_cast %246 : i32 to index
    %c0_110 = arith.constant 0 : index
    %c0_111 = arith.constant 0 : index
    %264 = vector.load %arg9[%263, %c0_110, %c0_111] : memref<8x1x8xi32, #tpu.memory_space<vmem>>, vector<1x1x8xi32>
    %265 = vector.shape_cast %264 : vector<1x1x8xi32> to vector<1x8xi32>
    %266 = vector.shape_cast %262 : vector<1x8xi32> to vector<1x1x8xi32>
    tpu.vector_store %arg9[%263, %c0_110, %c0_111], %266 {strides = array<i32>} : memref<8x1x8xi32, #tpu.memory_space<vmem>>, vector<1x1x8xi32>,
    %c1_i32_112 = arith.constant 1 : i32
    %c7_i32_113 = arith.constant 7 : i32
    %267 = arith.subi %c7_i32_113, %c1_i32_112 : i32
    %268 = arith.index_cast %267 : i32 to index
    %c0_114 = arith.constant 0 : index
    %c0_115 = arith.constant 0 : index
    %269 = vector.load %arg11[%268, %c0_114, %c0_115] : memref<8x5x8xi32, #tpu.memory_space<vmem>>, vector<1x5x8xi32>
    %270 = vector.shape_cast %269 : vector<1x5x8xi32> to vector<5x8xi32>
    %271 = vector.broadcast %262 : vector<1x8xi32> to vector<5x8xi32>
    %272 = arith.cmpi eq, %25, %271 : vector<5x8xi32>
    %c0_i32_116 = arith.constant 0 : i32
    %273 = vector.broadcast %c0_i32_116 : i32 to vector<5x8xi32>
    %274 = arith.select %272, %270, %273 : vector<5x8xi1>, vector<5x8xi32>
    %cst_117 = arith.constant dense<0> : vector<8xi32>
    %275 = vector.multi_reduction <add>, %274, %cst_117 [0] : vector<5x8xi32> to vector<8xi32>
    %276 = vector.shape_cast %275 : vector<8xi32> to vector<1x8xi32>
    %277 = vector.broadcast %267 : i32 to vector<1x8xi32>
    %278 = arith.cmpi eq, %277, %23 : vector<1x8xi32>
    %279 = vector.broadcast %267 : i32 to vector<1x8xi32>
    %280 = arith.cmpi slt, %279, %23 : vector<1x8xi32>
    %c0_i32_118 = arith.constant 0 : i32
    %281 = vector.broadcast %c0_i32_118 : i32 to vector<1x8xi32>
    %282 = arith.select %280, %276, %281 : vector<1x8xi1>, vector<1x8xi32>
    %283 = arith.select %278, %240, %282 : vector<1x8xi1>, vector<1x8xi32>
    %284 = arith.index_cast %267 : i32 to index
    %c0_119 = arith.constant 0 : index
    %c0_120 = arith.constant 0 : index
    %285 = vector.load %arg9[%284, %c0_119, %c0_120] : memref<8x1x8xi32, #tpu.memory_space<vmem>>, vector<1x1x8xi32>
    %286 = vector.shape_cast %285 : vector<1x1x8xi32> to vector<1x8xi32>
    %287 = vector.shape_cast %283 : vector<1x8xi32> to vector<1x1x8xi32>
    tpu.vector_store %arg9[%284, %c0_119, %c0_120], %287 {strides = array<i32>} : memref<8x1x8xi32, #tpu.memory_space<vmem>>, vector<1x1x8xi32>,
    %c2_i32_121 = arith.constant 2 : i32
    %c7_i32_122 = arith.constant 7 : i32
    %288 = arith.subi %c7_i32_122, %c2_i32_121 : i32
    %289 = arith.index_cast %288 : i32 to index
    %c0_123 = arith.constant 0 : index
    %c0_124 = arith.constant 0 : index
    %290 = vector.load %arg11[%289, %c0_123, %c0_124] : memref<8x5x8xi32, #tpu.memory_space<vmem>>, vector<1x5x8xi32>
    %291 = vector.shape_cast %290 : vector<1x5x8xi32> to vector<5x8xi32>
    %292 = vector.broadcast %283 : vector<1x8xi32> to vector<5x8xi32>
    %293 = arith.cmpi eq, %25, %292 : vector<5x8xi32>
    %c0_i32_125 = arith.constant 0 : i32
    %294 = vector.broadcast %c0_i32_125 : i32 to vector<5x8xi32>
    %295 = arith.select %293, %291, %294 : vector<5x8xi1>, vector<5x8xi32>
    %cst_126 = arith.constant dense<0> : vector<8xi32>
    %296 = vector.multi_reduction <add>, %295, %cst_126 [0] : vector<5x8xi32> to vector<8xi32>
    %297 = vector.shape_cast %296 : vector<8xi32> to vector<1x8xi32>
    %298 = vector.broadcast %288 : i32 to vector<1x8xi32>
    %299 = arith.cmpi eq, %298, %23 : vector<1x8xi32>
    %300 = vector.broadcast %288 : i32 to vector<1x8xi32>
    %301 = arith.cmpi slt, %300, %23 : vector<1x8xi32>
    %c0_i32_127 = arith.constant 0 : i32
    %302 = vector.broadcast %c0_i32_127 : i32 to vector<1x8xi32>
    %303 = arith.select %301, %297, %302 : vector<1x8xi1>, vector<1x8xi32>
    %304 = arith.select %299, %240, %303 : vector<1x8xi1>, vector<1x8xi32>
    %305 = arith.index_cast %288 : i32 to index
    %c0_128 = arith.constant 0 : index
    %c0_129 = arith.constant 0 : index
    %306 = vector.load %arg9[%305, %c0_128, %c0_129] : memref<8x1x8xi32, #tpu.memory_space<vmem>>, vector<1x1x8xi32>
    %307 = vector.shape_cast %306 : vector<1x1x8xi32> to vector<1x8xi32>
    %308 = vector.shape_cast %304 : vector<1x8xi32> to vector<1x1x8xi32>
    tpu.vector_store %arg9[%305, %c0_128, %c0_129], %308 {strides = array<i32>} : memref<8x1x8xi32, #tpu.memory_space<vmem>>, vector<1x1x8xi32>,
    %c3_i32_130 = arith.constant 3 : i32
    %c7_i32_131 = arith.constant 7 : i32
    %309 = arith.subi %c7_i32_131, %c3_i32_130 : i32
    %310 = arith.index_cast %309 : i32 to index
    %c0_132 = arith.constant 0 : index
    %c0_133 = arith.constant 0 : index
    %311 = vector.load %arg11[%310, %c0_132, %c0_133] : memref<8x5x8xi32, #tpu.memory_space<vmem>>, vector<1x5x8xi32>
    %312 = vector.shape_cast %311 : vector<1x5x8xi32> to vector<5x8xi32>
    %313 = vector.broadcast %304 : vector<1x8xi32> to vector<5x8xi32>
    %314 = arith.cmpi eq, %25, %313 : vector<5x8xi32>
    %c0_i32_134 = arith.constant 0 : i32
    %315 = vector.broadcast %c0_i32_134 : i32 to vector<5x8xi32>
    %316 = arith.select %314, %312, %315 : vector<5x8xi1>, vector<5x8xi32>
    %cst_135 = arith.constant dense<0> : vector<8xi32>
    %317 = vector.multi_reduction <add>, %316, %cst_135 [0] : vector<5x8xi32> to vector<8xi32>
    %318 = vector.shape_cast %317 : vector<8xi32> to vector<1x8xi32>
    %319 = vector.broadcast %309 : i32 to vector<1x8xi32>
    %320 = arith.cmpi eq, %319, %23 : vector<1x8xi32>
    %321 = vector.broadcast %309 : i32 to vector<1x8xi32>
    %322 = arith.cmpi slt, %321, %23 : vector<1x8xi32>
    %c0_i32_136 = arith.constant 0 : i32
    %323 = vector.broadcast %c0_i32_136 : i32 to vector<1x8xi32>
    %324 = arith.select %322, %318, %323 : vector<1x8xi1>, vector<1x8xi32>
    %325 = arith.select %320, %240, %324 : vector<1x8xi1>, vector<1x8xi32>
    %326 = arith.index_cast %309 : i32 to index
    %c0_137 = arith.constant 0 : index
    %c0_138 = arith.constant 0 : index
    %327 = vector.load %arg9[%326, %c0_137, %c0_138] : memref<8x1x8xi32, #tpu.memory_space<vmem>>, vector<1x1x8xi32>
    %328 = vector.shape_cast %327 : vector<1x1x8xi32> to vector<1x8xi32>
    %329 = vector.shape_cast %325 : vector<1x8xi32> to vector<1x1x8xi32>
    tpu.vector_store %arg9[%326, %c0_137, %c0_138], %329 {strides = array<i32>} : memref<8x1x8xi32, #tpu.memory_space<vmem>>, vector<1x1x8xi32>,
    %c4_i32_139 = arith.constant 4 : i32
    %c7_i32_140 = arith.constant 7 : i32
    %330 = arith.subi %c7_i32_140, %c4_i32_139 : i32
    %331 = arith.index_cast %330 : i32 to index
    %c0_141 = arith.constant 0 : index
    %c0_142 = arith.constant 0 : index
    %332 = vector.load %arg11[%331, %c0_141, %c0_142] : memref<8x5x8xi32, #tpu.memory_space<vmem>>, vector<1x5x8xi32>
    %333 = vector.shape_cast %332 : vector<1x5x8xi32> to vector<5x8xi32>
    %334 = vector.broadcast %325 : vector<1x8xi32> to vector<5x8xi32>
    %335 = arith.cmpi eq, %25, %334 : vector<5x8xi32>
    %c0_i32_143 = arith.constant 0 : i32
    %336 = vector.broadcast %c0_i32_143 : i32 to vector<5x8xi32>
    %337 = arith.select %335, %333, %336 : vector<5x8xi1>, vector<5x8xi32>
    %cst_144 = arith.constant dense<0> : vector<8xi32>
    %338 = vector.multi_reduction <add>, %337, %cst_144 [0] : vector<5x8xi32> to vector<8xi32>
    %339 = vector.shape_cast %338 : vector<8xi32> to vector<1x8xi32>
    %340 = vector.broadcast %330 : i32 to vector<1x8xi32>
    %341 = arith.cmpi eq, %340, %23 : vector<1x8xi32>
    %342 = vector.broadcast %330 : i32 to vector<1x8xi32>
    %343 = arith.cmpi slt, %342, %23 : vector<1x8xi32>
    %c0_i32_145 = arith.constant 0 : i32
    %344 = vector.broadcast %c0_i32_145 : i32 to vector<1x8xi32>
    %345 = arith.select %343, %339, %344 : vector<1x8xi1>, vector<1x8xi32>
    %346 = arith.select %341, %240, %345 : vector<1x8xi1>, vector<1x8xi32>
    %347 = arith.index_cast %330 : i32 to index
    %c0_146 = arith.constant 0 : index
    %c0_147 = arith.constant 0 : index
    %348 = vector.load %arg9[%347, %c0_146, %c0_147] : memref<8x1x8xi32, #tpu.memory_space<vmem>>, vector<1x1x8xi32>
    %349 = vector.shape_cast %348 : vector<1x1x8xi32> to vector<1x8xi32>
    %350 = vector.shape_cast %346 : vector<1x8xi32> to vector<1x1x8xi32>
    tpu.vector_store %arg9[%347, %c0_146, %c0_147], %350 {strides = array<i32>} : memref<8x1x8xi32, #tpu.memory_space<vmem>>, vector<1x1x8xi32>,
    %c5_i32_148 = arith.constant 5 : i32
    %c7_i32_149 = arith.constant 7 : i32
    %351 = arith.subi %c7_i32_149, %c5_i32_148 : i32
    %352 = arith.index_cast %351 : i32 to index
    %c0_150 = arith.constant 0 : index
    %c0_151 = arith.constant 0 : index
    %353 = vector.load %arg11[%352, %c0_150, %c0_151] : memref<8x5x8xi32, #tpu.memory_space<vmem>>, vector<1x5x8xi32>
    %354 = vector.shape_cast %353 : vector<1x5x8xi32> to vector<5x8xi32>
    %355 = vector.broadcast %346 : vector<1x8xi32> to vector<5x8xi32>
    %356 = arith.cmpi eq, %25, %355 : vector<5x8xi32>
    %c0_i32_152 = arith.constant 0 : i32
    %357 = vector.broadcast %c0_i32_152 : i32 to vector<5x8xi32>
    %358 = arith.select %356, %354, %357 : vector<5x8xi1>, vector<5x8xi32>
    %cst_153 = arith.constant dense<0> : vector<8xi32>
    %359 = vector.multi_reduction <add>, %358, %cst_153 [0] : vector<5x8xi32> to vector<8xi32>
    %360 = vector.shape_cast %359 : vector<8xi32> to vector<1x8xi32>
    %361 = vector.broadcast %351 : i32 to vector<1x8xi32>
    %362 = arith.cmpi eq, %361, %23 : vector<1x8xi32>
    %363 = vector.broadcast %351 : i32 to vector<1x8xi32>
    %364 = arith.cmpi slt, %363, %23 : vector<1x8xi32>
    %c0_i32_154 = arith.constant 0 : i32
    %365 = vector.broadcast %c0_i32_154 : i32 to vector<1x8xi32>
    %366 = arith.select %364, %360, %365 : vector<1x8xi1>, vector<1x8xi32>
    %367 = arith.select %362, %240, %366 : vector<1x8xi1>, vector<1x8xi32>
    %368 = arith.index_cast %351 : i32 to index
    %c0_155 = arith.constant 0 : index
    %c0_156 = arith.constant 0 : index
    %369 = vector.load %arg9[%368, %c0_155, %c0_156] : memref<8x1x8xi32, #tpu.memory_space<vmem>>, vector<1x1x8xi32>
    %370 = vector.shape_cast %369 : vector<1x1x8xi32> to vector<1x8xi32>
    %371 = vector.shape_cast %367 : vector<1x8xi32> to vector<1x1x8xi32>
    tpu.vector_store %arg9[%368, %c0_155, %c0_156], %371 {strides = array<i32>} : memref<8x1x8xi32, #tpu.memory_space<vmem>>, vector<1x1x8xi32>,
    %c6_i32_157 = arith.constant 6 : i32
    %c7_i32_158 = arith.constant 7 : i32
    %372 = arith.subi %c7_i32_158, %c6_i32_157 : i32
    %373 = arith.index_cast %372 : i32 to index
    %c0_159 = arith.constant 0 : index
    %c0_160 = arith.constant 0 : index
    %374 = vector.load %arg11[%373, %c0_159, %c0_160] : memref<8x5x8xi32, #tpu.memory_space<vmem>>, vector<1x5x8xi32>
    %375 = vector.shape_cast %374 : vector<1x5x8xi32> to vector<5x8xi32>
    %376 = vector.broadcast %367 : vector<1x8xi32> to vector<5x8xi32>
    %377 = arith.cmpi eq, %25, %376 : vector<5x8xi32>
    %c0_i32_161 = arith.constant 0 : i32
    %378 = vector.broadcast %c0_i32_161 : i32 to vector<5x8xi32>
    %379 = arith.select %377, %375, %378 : vector<5x8xi1>, vector<5x8xi32>
    %cst_162 = arith.constant dense<0> : vector<8xi32>
    %380 = vector.multi_reduction <add>, %379, %cst_162 [0] : vector<5x8xi32> to vector<8xi32>
    %381 = vector.shape_cast %380 : vector<8xi32> to vector<1x8xi32>
    %382 = vector.broadcast %372 : i32 to vector<1x8xi32>
    %383 = arith.cmpi eq, %382, %23 : vector<1x8xi32>
    %384 = vector.broadcast %372 : i32 to vector<1x8xi32>
    %385 = arith.cmpi slt, %384, %23 : vector<1x8xi32>
    %c0_i32_163 = arith.constant 0 : i32
    %386 = vector.broadcast %c0_i32_163 : i32 to vector<1x8xi32>
    %387 = arith.select %385, %381, %386 : vector<1x8xi1>, vector<1x8xi32>
    %388 = arith.select %383, %240, %387 : vector<1x8xi1>, vector<1x8xi32>
    %389 = arith.index_cast %372 : i32 to index
    %c0_164 = arith.constant 0 : index
    %c0_165 = arith.constant 0 : index
    %390 = vector.load %arg9[%389, %c0_164, %c0_165] : memref<8x1x8xi32, #tpu.memory_space<vmem>>, vector<1x1x8xi32>
    %391 = vector.shape_cast %390 : vector<1x1x8xi32> to vector<1x8xi32>
    %392 = vector.shape_cast %388 : vector<1x8xi32> to vector<1x1x8xi32>
    tpu.vector_store %arg9[%389, %c0_164, %c0_165], %392 {strides = array<i32>} : memref<8x1x8xi32, #tpu.memory_space<vmem>>, vector<1x1x8xi32>,
    %c7_i32_166 = arith.constant 7 : i32
    %c7_i32_167 = arith.constant 7 : i32
    %393 = arith.subi %c7_i32_167, %c7_i32_166 : i32
    %394 = arith.index_cast %393 : i32 to index
    %c0_168 = arith.constant 0 : index
    %c0_169 = arith.constant 0 : index
    %395 = vector.load %arg11[%394, %c0_168, %c0_169] : memref<8x5x8xi32, #tpu.memory_space<vmem>>, vector<1x5x8xi32>
    %396 = vector.shape_cast %395 : vector<1x5x8xi32> to vector<5x8xi32>
    %397 = vector.broadcast %388 : vector<1x8xi32> to vector<5x8xi32>
    %398 = arith.cmpi eq, %25, %397 : vector<5x8xi32>
    %c0_i32_170 = arith.constant 0 : i32
    %399 = vector.broadcast %c0_i32_170 : i32 to vector<5x8xi32>
    %400 = arith.select %398, %396, %399 : vector<5x8xi1>, vector<5x8xi32>
    %cst_171 = arith.constant dense<0> : vector<8xi32>
    %401 = vector.multi_reduction <add>, %400, %cst_171 [0] : vector<5x8xi32> to vector<8xi32>
    %402 = vector.shape_cast %401 : vector<8xi32> to vector<1x8xi32>
    %403 = vector.broadcast %393 : i32 to vector<1x8xi32>
    %404 = arith.cmpi eq, %403, %23 : vector<1x8xi32>
    %405 = vector.broadcast %393 : i32 to vector<1x8xi32>
    %406 = arith.cmpi slt, %405, %23 : vector<1x8xi32>
    %c0_i32_172 = arith.constant 0 : i32
    %407 = vector.broadcast %c0_i32_172 : i32 to vector<1x8xi32>
    %408 = arith.select %406, %402, %407 : vector<1x8xi1>, vector<1x8xi32>
    %409 = arith.select %404, %240, %408 : vector<1x8xi1>, vector<1x8xi32>
    %410 = arith.index_cast %393 : i32 to index
    %c0_173 = arith.constant 0 : index
    %c0_174 = arith.constant 0 : index
    %411 = vector.load %arg9[%410, %c0_173, %c0_174] : memref<8x1x8xi32, #tpu.memory_space<vmem>>, vector<1x1x8xi32>
    %412 = vector.shape_cast %411 : vector<1x1x8xi32> to vector<1x8xi32>
    %413 = vector.shape_cast %409 : vector<1x8xi32> to vector<1x1x8xi32>
    tpu.vector_store %arg9[%410, %c0_173, %c0_174], %413 {strides = array<i32>} : memref<8x1x8xi32, #tpu.memory_space<vmem>>, vector<1x1x8xi32>,
    %c8_i32 = arith.constant 8 : i32
    return
  }
  func.func @transform_0(%arg0: i32) -> (i32, i32, i32) {
    %c0_i32 = arith.constant 0 : i32
    %c0_i32_0 = arith.constant 0 : i32
    %c0_i32_1 = arith.constant 0 : i32
    %c0_i32_2 = arith.constant 0 : i32
    return %c0_i32, %c0_i32_0, %c0_i32_1 : i32, i32, i32
  }
  func.func @transform_1(%arg0: i32) -> (i32, i32, i32) {
    %c0_i32 = arith.constant 0 : i32
    %c0_i32_0 = arith.constant 0 : i32
    %c0_i32_1 = arith.constant 0 : i32
    %c0_i32_2 = arith.constant 0 : i32
    return %c0_i32, %c0_i32_0, %c0_i32_1 : i32, i32, i32
  }
  func.func @transform_2(%arg0: i32) -> (i32, i32, i32) {
    %c0_i32 = arith.constant 0 : i32
    %c0_i32_0 = arith.constant 0 : i32
    %c0_i32_1 = arith.constant 0 : i32
    %c0_i32_2 = arith.constant 0 : i32
    return %c0_i32, %c0_i32_0, %c0_i32_1 : i32, i32, i32
  }
  func.func @transform_3(%arg0: i32) -> (i32, i32) {
    %c0_i32 = arith.constant 0 : i32
    %c0_i32_0 = arith.constant 0 : i32
    %c0_i32_1 = arith.constant 0 : i32
    return %c0_i32, %c0_i32_0 : i32, i32
  }
  func.func @transform_4(%arg0: i32) -> (i32, i32) {
    %c0_i32 = arith.constant 0 : i32
    %c0_i32_0 = arith.constant 0 : i32
    %c0_i32_1 = arith.constant 0 : i32
    return %c0_i32, %c0_i32_0 : i32, i32
  }
  func.func @transform_5(%arg0: i32) -> (i32, i32) {
    %c0_i32 = arith.constant 0 : i32
    %c0_i32_0 = arith.constant 0 : i32
    %c0_i32_1 = arith.constant 0 : i32
    return %c0_i32, %c0_i32_0 : i32, i32
  }
  func.func @transform_6(%arg0: i32) -> (i32, i32) {
    %c0_i32 = arith.constant 0 : i32
    %c0_i32_0 = arith.constant 0 : i32
    %c0_i32_1 = arith.constant 0 : i32
    return %c0_i32, %c0_i32_0 : i32, i32
  }
  func.func @transform_7(%arg0: i32) -> (i32, i32) {
    %c0_i32 = arith.constant 0 : i32
    %c0_i32_0 = arith.constant 0 : i32
    %c0_i32_1 = arith.constant 0 : i32
    return %c0_i32, %c0_i32_0 : i32, i32
  }
  func.func @transform_8(%arg0: i32) -> (i32, i32, i32) {
    %c0_i32 = arith.constant 0 : i32
    %c0_i32_0 = arith.constant 0 : i32
    %c0_i32_1 = arith.constant 0 : i32
    %c0_i32_2 = arith.constant 0 : i32
    return %c0_i32, %c0_i32_0, %c0_i32_1 : i32, i32, i32
  }
  func.func @transform_9(%arg0: i32) -> (i32, i32) {
    %c0_i32 = arith.constant 0 : i32
    %c0_i32_0 = arith.constant 0 : i32
    %c0_i32_1 = arith.constant 0 : i32
    return %c0_i32, %c0_i32_0 : i32, i32
  }
}

</mosaic_0001>

<llo_original>
// kernel: baseline_forward.2
$region0: #{baseline_forward.2}
  #allocation0 [shape = 'u32[]', space=smem, size = 0x4, offset = 0x4, fixed_abs, tag = 'smem constant byte address 0x4 - core index']
  #allocation1 [shape = 'u32[144,128]{1,0:T(1,128)}', space=vmem, size = 0x12000, scoped, tag = 'internal scratch']
  %s0 = inlined_call_operand.vmem [shape: f32[16,32], index: 0, kind: input, shape index: {}]
  %s1 = inlined_call_operand.vmem [shape: bf16[32,128], index: 1, kind: input, shape index: {}]
  %s2 = inlined_call_operand.vmem [shape: f32[1,128], index: 2, kind: input, shape index: {}]
  %s3 = inlined_call_operand.vmem [shape: f32[16,128], index: 3, kind: output, shape index: {}]
  %s4 = sld [smem:[#allocation0]]
  $region22: #{baseline_forward.2} parent=0
    _
  %s6 = ssub.s32 1, %s4
  %s7 = scalar_select 0, %s6, %s4
  // Predicated region
  $region2: #{baseline_forward.2} parent=0 // pred_check
    _
  $region3: #{baseline_forward.2} parent=0 // pred_check_branch
    %9 = sbr.rel (0) target = $region5
  $region4: #{baseline_forward.2} parent=0 // pred_region
    _
  $region5: #{baseline_forward.2} parent=0 // pred_fallthru
    _
  // Predicated region
  $region6: #{baseline_forward.2} parent=0 // pred_check
    _
  $region7: #{baseline_forward.2} parent=0 // pred_check_branch
    %11 = sbr.rel (0) target = $region9
  $region8: #{baseline_forward.2} parent=0 // pred_region
    _
  $region9: #{baseline_forward.2} parent=0 // pred_fallthru
    _
  // Predicated region
  $region10: #{baseline_forward.2} parent=0 // pred_check
    _
  $region11: #{baseline_forward.2} parent=0 // pred_check_branch
    %13 = sbr.rel (0) target = $region13
  $region12: #{baseline_forward.2} parent=0 // pred_region
    _
  $region13: #{baseline_forward.2} parent=0 // pred_fallthru
    _
  %v15 = vld [vmem:[%s0] sm:$0xff]
  %v16 = vld [vmem:[%s0 + $0x8] sm:$0xff]
  %v17 = vpack.c.bf16 %v16, %v15
  %v18 = vld [vmem:[%s1] sm:$0xf]
  %v19 = vld [vmem:[%s1 + $0x4] sm:$0xf]
  %v20 = vld [vmem:[%s1 + $0x8] sm:$0xf]
  %v21 = vld [vmem:[%s1 + $0xc] sm:$0xf]
  %v22 = vld [vmem:[%s2] sm:$0x1]
  %v24 = vlaneseq
  %v25 = vshrl.u32 %v24, 7
  %v26 = vsub.s32 0, %v25
  %v27 = vrot.slane %v22, %v26
  %v33 = vunpack.c.l.b16 %v18
  %v34 = vunpack.c.l.b16 %v19
  %v35 = vunpack.c.l.b16 %v20
  %v36 = vunpack.c.l.b16 %v21
  %v37 = vpack.c.b16 %v34, %v33
  %v38 = vpack.c.b16 %v36, %v35
  %vm41 = vcmask 261120
  %v43 = vsel %vm41, %v17, 0
  %45 = vmatprep.subr.bf16.mxu0 0
  %46 = vmatpush1.bf16.msra.mxu0 0
  %47 = vmatprep.subr.bf16.mxu0 0
  %48 = vmatpush1.bf16.msra.mxu0 0
  %49 = vmatprep.subr.bf16.mxu0 0
  %50 = vmatpush1.bf16.msra.mxu0 0
  %51 = vmatprep.subr.bf16.mxu0 0
  %52 = vmatpush1.bf16.msra.mxu0 0
  %53 = vmatprep.subr.bf16.mxu0 0
  %54 = vmatpush1.bf16.msra.mxu0 0
  %55 = vmatprep.subr.bf16.mxu0 0
  %56 = vmatpush1.bf16.msra.mxu0 0
  %57 = vmatprep.subr.bf16.mxu0 0
  %58 = vmatpush1.bf16.msra.mxu0 %v38
  %59 = vmatprep.subr.bf16.mxu0 0
  %60 = vmatpush1.bf16.msra.mxu0 %v37
  %61 = vmatprep.subr.bf16.mxu0 0
  %62 = vmatpush2.bf16.msra.mxu0 0
  %63 = vmatprep.subr.bf16.mxu0 0
  %64 = vmatpush2.bf16.msra.mxu0 0
  %65 = vmatprep.subr.bf16.mxu0 0
  %66 = vmatpush2.bf16.msra.mxu0 0
  %67 = vmatprep.subr.bf16.mxu0 0
  %68 = vmatpush2.bf16.msra.mxu0 0
  %69 = vmatprep.subr.bf16.mxu0 0
  %70 = vmatpush2.bf16.msra.mxu0 0
  %71 = vmatprep.subr.bf16.mxu0 0
  %72 = vmatpush2.bf16.msra.mxu0 0
  %73 = vmatprep.subr.bf16.mxu0 0
  %74 = vmatpush2.bf16.msra.mxu0 0
  %75 = vmatprep.subr.bf16.mxu0 0
  %76 = vmatpush2.bf16.msra.mxu0 0
  %77 = vmatprep.mubr.bf16.mxu0 0
  %78 = vmatmul.mubr.bf16.gmra.mxu0 %v43
  %v79 = vpop.f32.mrf.mxu0
  %v80 = vadd.f32 %v27, %v79
  %v81 = vpop.f32.mrf.mxu0
  %v82 = vpop.f32.mrf.mxu0
  %v83 = vadd.f32 %v27, %v82
  %v84 = vpop.f32.mrf.mxu0
  %85 = vdwg.mxu0
  %86 = vst [vmem:[%s3] sm:$0xff] %v80
  %87 = vst [vmem:[%s3 + $0x8] sm:$0xff] %v83
  // Predicated region
  $region14: #{baseline_forward.2} parent=0 // pred_check
    _
  $region15: #{baseline_forward.2} parent=0 // pred_check_branch
    %89 = sbr.rel (0) target = $region17
  $region16: #{baseline_forward.2} parent=0 // pred_region
    _
  $region17: #{baseline_forward.2} parent=0 // pred_fallthru
    _
  // Predicated region
  $region18: #{baseline_forward.2} parent=0 // pred_check
    _
  $region19: #{baseline_forward.2} parent=0 // pred_check_branch
    %91 = sbr.rel (0) target = $region21
  $region20: #{baseline_forward.2} parent=0 // pred_region
    _
  $region21: #{baseline_forward.2} parent=0 // pred_fallthru
    _

// kernel: baseline_forward.3
$region0: #{baseline_forward.3}
  #allocation0 [shape = 'u32[]', space=smem, size = 0x4, offset = 0x4, fixed_abs, tag = 'smem constant byte address 0x4 - core index']
  #allocation1 [shape = 'u32[144,128]{1,0:T(1,128)}', space=vmem, size = 0x12000, scoped, tag = 'internal scratch']
  #allocation2 [shape = 's32[8,5,8]{2,1,0:T(8,128)}', space=vmem, size = 0x8000, scoped, tag = 'scratch operand']
  %s0 = inlined_call_operand.vmem [shape: f32[8,5,8], index: 0, kind: input, shape index: {}]
  %s1 = inlined_call_operand.vmem [shape: f32[8,1,8], index: 1, kind: input, shape index: {}]
  %s2 = inlined_call_operand.vmem [shape: f32[5,5,8], index: 2, kind: input, shape index: {}]
  %s3 = inlined_call_operand.vmem [shape: f32[5,8], index: 3, kind: input, shape index: {}]
  %s4 = inlined_call_operand.vmem [shape: f32[5,8], index: 4, kind: input, shape index: {}]
  %s5 = inlined_call_operand.vmem [shape: bf16[2,32], index: 5, kind: input, shape index: {}]
  %s6 = inlined_call_operand.vmem [shape: bf16[32,2], index: 6, kind: input, shape index: {}]
  %s7 = inlined_call_operand.vmem [shape: f32[1,2], index: 7, kind: input, shape index: {}]
  %s8 = inlined_call_operand.vmem [shape: s32[8,1,8], index: 8, kind: output, shape index: {0}]
  %s9 = inlined_call_operand.vmem [shape: s32[2,1], index: 9, kind: output, shape index: {1}]
  %10 = xla_tuple %s8, %s9
  %s11 = sld [smem:[#allocation0]]
  $region50: #{baseline_forward.3} parent=0
    _
  %s13 = ssub.s32 1, %s11
  %s14 = scalar_select 0, %s13, %s11
  // Predicated region
  $region2: #{baseline_forward.3} parent=0 // pred_check
    _
  $region3: #{baseline_forward.3} parent=0 // pred_check_branch
    %16 = sbr.rel (0) target = $region5
  $region4: #{baseline_forward.3} parent=0 // pred_region
    _
  $region5: #{baseline_forward.3} parent=0 // pred_fallthru
    _
  // Predicated region
  $region6: #{baseline_forward.3} parent=0 // pred_check
    _
  $region7: #{baseline_forward.3} parent=0 // pred_check_branch
    %18 = sbr.rel (0) target = $region9
  $region8: #{baseline_forward.3} parent=0 // pred_region
    _
  $region9: #{baseline_forward.3} parent=0 // pred_fallthru
    _
  // Predicated region
  $region10: #{baseline_forward.3} parent=0 // pred_check
    _
  $region11: #{baseline_forward.3} parent=0 // pred_check_branch
    %20 = sbr.rel (0) target = $region13
  $region12: #{baseline_forward.3} parent=0 // pred_region
    _
  $region13: #{baseline_forward.3} parent=0 // pred_fallthru
    _
  // Predicated region
  $region14: #{baseline_forward.3} parent=0 // pred_check
    _
  $region15: #{baseline_forward.3} parent=0 // pred_check_branch
    %22 = sbr.rel (0) target = $region17
  $region16: #{baseline_forward.3} parent=0 // pred_region
    _
  $region17: #{baseline_forward.3} parent=0 // pred_fallthru
    _
  // Predicated region
  $region18: #{baseline_forward.3} parent=0 // pred_check
    _
  $region19: #{baseline_forward.3} parent=0 // pred_check_branch
    %24 = sbr.rel (0) target = $region21
  $region20: #{baseline_forward.3} parent=0 // pred_region
    _
  $region21: #{baseline_forward.3} parent=0 // pred_fallthru
    _
  // Predicated region
  $region22: #{baseline_forward.3} parent=0 // pred_check
    _
  $region23: #{baseline_forward.3} parent=0 // pred_check_branch
    %26 = sbr.rel (0) target = $region25
  $region24: #{baseline_forward.3} parent=0 // pred_region
    _
  $region25: #{baseline_forward.3} parent=0 // pred_fallthru
    _
  // Predicated region
  $region26: #{baseline_forward.3} parent=0 // pred_check
    _
  $region27: #{baseline_forward.3} parent=0 // pred_check_branch
    %28 = sbr.rel (0) target = $region29
  $region28: #{baseline_forward.3} parent=0 // pred_region
    _
  $region29: #{baseline_forward.3} parent=0 // pred_fallthru
    _
  // Predicated region
  $region30: #{baseline_forward.3} parent=0 // pred_check
    _
  $region31: #{baseline_forward.3} parent=0 // pred_check_branch
    %30 = sbr.rel (0) target = $region33
  $region32: #{baseline_forward.3} parent=0 // pred_region
    _
  $region33: #{baseline_forward.3} parent=0 // pred_fallthru
    _
  %v32 = vld [vmem:[%s5] sm:$0x1]
  %v33 = vld [vmem:[%s6] sm:$0xf]
  %v34 = vld [vmem:[%s6 + $0x4] sm:$0xf]
  %v35 = vld [vmem:[%s6 + $0x8] sm:$0xf]
  %v36 = vld [vmem:[%s6 + $0xc] sm:$0xf]
  %v37 = vld [vmem:[%s7] sm:$0x1]
  %v39 = vlaneseq
  %v40 = vshrl.u32 %v39, 7
  %v41 = vsub.s32 0, %v40
  %v42 = vrot.slane %v37, %v41
  %v48 = vunpack.c.l.b16 %v33
  %v49 = vunpack.c.l.b16 %v34
  %v50 = vunpack.c.l.b16 %v35
  %v51 = vunpack.c.l.b16 %v36
  %v52 = vpack.c.b16 %v49, %v48
  %v53 = vpack.c.b16 %v51, %v50
  %vm56 = vcmask 261120
  %v58 = vsel %vm56, %v32, 0
  %60 = vmatprep.subr.bf16.mxu0 0
  %61 = vmatpush1.bf16.msra.mxu0 0
  %62 = vmatprep.subr.bf16.mxu0 0
  %63 = vmatpush1.bf16.msra.mxu0 0
  %64 = vmatprep.subr.bf16.mxu0 0
  %65 = vmatpush1.bf16.msra.mxu0 0
  %66 = vmatprep.subr.bf16.mxu0 0
  %67 = vmatpush1.bf16.msra.mxu0 0
  %68 = vmatprep.subr.bf16.mxu0 0
  %69 = vmatpush1.bf16.msra.mxu0 0
  %70 = vmatprep.subr.bf16.mxu0 0
  %71 = vmatpush1.bf16.msra.mxu0 0
  %72 = vmatprep.subr.bf16.mxu0 0
  %73 = vmatpush1.bf16.msra.mxu0 %v53
  %74 = vmatprep.subr.bf16.mxu0 0
  %75 = vmatpush1.bf16.msra.mxu0 %v52
  %76 = vmatprep.subr.bf16.mxu0 0
  %77 = vmatpush2.bf16.msra.mxu0 0
  %78 = vmatprep.subr.bf16.mxu0 0
  %79 = vmatpush2.bf16.msra.mxu0 0
  %80 = vmatprep.subr.bf16.mxu0 0
  %81 = vmatpush2.bf16.msra.mxu0 0
  %82 = vmatprep.subr.bf16.mxu0 0
  %83 = vmatpush2.bf16.msra.mxu0 0
  %84 = vmatprep.subr.bf16.mxu0 0
  %85 = vmatpush2.bf16.msra.mxu0 0
  %86 = vmatprep.subr.bf16.mxu0 0
  %87 = vmatpush2.bf16.msra.mxu0 0
  %88 = vmatprep.subr.bf16.mxu0 0
  %89 = vmatpush2.bf16.msra.mxu0 0
  %90 = vmatprep.subr.bf16.mxu0 0
  %91 = vmatpush2.bf16.msra.mxu0 0
  %92 = vmatprep.mubr.bf16.mxu0 0
  %93 = vmatmul.mubr.bf16.gmra.mxu0 %v58
  %v94 = vpop.f32.mrf.mxu0
  %v95 = vadd.f32 %v42, %v94
  %v96 = vpop.f32.mrf.mxu0
  %v97 = vpop.f32.mrf.mxu0
  %v98 = vpop.f32.mrf.mxu0
  %99 = vdwg.mxu0
  %v100 = vlaneseq
  %v101 = vand.u32 %v100, 127
  %vm102 = vcmask 9216
  %v103 = vsel %vm102, %v95, -inf
  %104 = vmax.xlane.f32.xlu0 %v103
  %v105 = vpop.xlane.xlu0 %104
  %vm106 = vcmp.eq.f32.partialorder %v95, %v105
  %v107 = vsel %vm106, %v101, 2
  %v108 = vsel %vm102, %v107, 2147483647
  %v109 = vand.u32 %v108, 65535
  %v110 = vshra.s32 %v108, 16
  %v111 = vcvt.s32.f32 %v109
  %v112 = vcvt.s32.f32 %v110
  %113 = vmin.xlane.f32.xlu0 %v112
  %v114 = vpop.xlane.xlu0 %113
  %vm115 = vcmp.eq.f32.partialorder %v112, %v114
  %v116 = vsel %vm115, %v111, inf
  %117 = vmin.xlane.f32.xlu0 %v116
  %v118 = vpop.xlane.xlu0 %117
  %v119 = vcvt.f32.s32 %v118
  %v120 = vcvt.f32.s32 %v114
  %v121 = vshll.u32 %v120, 16
  %v122 = vadd.s32 %v121, %v119
  %vm123 = vcmask 1024
  %124 = vst.msk [vmem:[%s9] sm:$0x3] %vm123, %v122
  %v125 = vld [vmem:[%s2] sm:$0x1f]
  %v126 = vld [vmem:[%s2 + $0x8] sm:$0x1f]
  %v127 = vld [vmem:[%s2 + $0x10] sm:$0x1f]
  %v128 = vld [vmem:[%s2 + $0x18] sm:$0x1f]
  %v129 = vld [vmem:[%s2 + $0x20] sm:$0x1f]
  %v130 = vld [vmem:[%s3] sm:$0x1f]
  %v131 = vld [vmem:[%s4] sm:$0x1f]
  %v132 = vld [vmem:[%s1] sm:$0x1]
  %v133 = vld [vmem:[%s1 + $0x1] sm:$0x1]
  %v134 = vld [vmem:[%s1 + $0x2] sm:$0x1]
  %v135 = vld [vmem:[%s1 + $0x3] sm:$0x1]
  %v136 = vld [vmem:[%s1 + $0x4] sm:$0x1]
  %v137 = vld [vmem:[%s1 + $0x5] sm:$0x1]
  %v138 = vld [vmem:[%s1 + $0x6] sm:$0x1]
  %v139 = vld [vmem:[%s1 + $0x7] sm:$0x1]
  %vm140 = vcmask 57344
  %v141 = vsel %vm140, %v132, 0.0
  %v142 = vsel %vm140, %v133, 0.0
  %v143 = vadd.f32 %v141, %v142
  %v144 = vsel %vm140, %v134, 0.0
  %v145 = vadd.f32 %v143, %v144
  %v146 = vsel %vm140, %v135, 0.0
  %v147 = vadd.f32 %v145, %v146
  %v148 = vsel %vm140, %v136, 0.0
  %v149 = vadd.f32 %v147, %v148
  %v150 = vsel %vm140, %v137, 0.0
  %v151 = vadd.f32 %v149, %v150
  %v152 = vsel %vm140, %v138, 0.0
  %v153 = vadd.f32 %v151, %v152
  %v154 = vsel %vm140, %v139, 0.0
  %v155 = vadd.f32 %v153, %v154
  %v156 = vcvt.f32.s32.to.zero.pseudo %v155
  %v157 = vsub.s32 %v156, 1
  %v158 = vlaneseq
  %v159 = vshrl.u32 %v158, 7
  %v160 = vld [vmem:[%s0] sm:$0x1f]
  %v161 = vadd.f32 %v130, %v160
  %s162 = scalar_lea.vmem %s0, 8
  %v163 = vld [vmem:[%s162] sm:$0x1f]
  %s164 = scalar_lea.vmem %s1, 1
  %v165 = vld [vmem:[%s164] sm:$0x1]
  %v166 = vadd.f32 %v161, %v125
  %v167 = vadd.f32 %v161, %v126
  %v168 = vadd.f32 %v161, %v127
  %v169 = vadd.f32 %v161, %v128
  %v170 = vadd.f32 %v161, %v129
  %v172 = vcombine.high %v163, %v163
  %v174 = vunpack.c.l.s4 1966171168
  %v175 = vunpack.c.0.s8 %v174
  %v176 = vlaneseq
  %v177 = vshrl.u32 %v176, 7
  %v178 = vsub.s32 %v175, %v177
  %v179 = vrot.slane %v163, %v178
  %v181 = vunpack.c.l.s4 1966171168
  %v182 = vunpack.c.0.s8 %v181
  %v183 = vlaneseq
  %v184 = vshrl.u32 %v183, 7
  %v185 = vsub.s32 %v182, %v184
  %v186 = vrot.slane %v172, %v185
  %v187 = vcombine.high %v179, %v179
  %v189 = vunpack.c.l.s4 1966171168
  %v190 = vunpack.c.0.s8 %v189
  %v191 = vlaneseq
  %v192 = vshrl.u32 %v191, 7
  %v193 = vsub.s32 %v190, %v192
  %v194 = vrot.slane %v179, %v193
  %v196 = vunpack.c.l.s4 1966171168
  %v197 = vunpack.c.0.s8 %v196
  %v198 = vlaneseq
  %v199 = vshrl.u32 %v198, 7
  %v200 = vsub.s32 %v197, %v199
  %v201 = vrot.slane %v186, %v200
  %v203 = vunpack.c.l.s4 1966171168
  %v204 = vunpack.c.0.s8 %v203
  %v205 = vlaneseq
  %v206 = vshrl.u32 %v205, 7
  %v207 = vsub.s32 %v204, %v206
  %v208 = vrot.slane %v187, %v207
  %v209 = vcombine.high %v194, %v194
  %v210 = vcombine.high %v208, %v208
  %v211 = vlaneseq
  %v212 = vshrl.u32 %v211, 7
  %v213 = vsub.s32 0, %v212
  %v214 = vrot.slane %v194, %v213
  %v215 = vlaneseq
  %v216 = vshrl.u32 %v215, 7
  %v217 = vsub.s32 0, %v216
  %v218 = vrot.slane %v208, %v217
  %v219 = vlaneseq
  %v220 = vshrl.u32 %v219, 7
  %v221 = vsub.s32 0, %v220
  %v222 = vrot.slane %v209, %v221
  %v223 = vlaneseq
  %v224 = vshrl.u32 %v223, 7
  %v225 = vsub.s32 0, %v224
  %v226 = vrot.slane %v210, %v225
  %v227 = vlaneseq
  %v228 = vshrl.u32 %v227, 7
  %v229 = vsub.s32 0, %v228
  %v230 = vrot.slane %v201, %v229
  %v236 = vadd.f32 %v166, %v214
  %v237 = vadd.f32 %v167, %v218
  %v238 = vadd.f32 %v168, %v222
  %v239 = vadd.f32 %v169, %v226
  %v240 = vadd.f32 %v170, %v230
  %vm241 = vcmask 61440
  %v242 = vsel %vm241, %v236, -inf
  %v243 = vrot.slane %v242, 4
  %v244 = vmax.f32 %v242, %v243
  %v245 = vrot.slane %v244, 2
  %v246 = vmax.f32 %v244, %v245
  %v247 = vrot.slane %v246, 1
  %v248 = vmax.f32 %v246, %v247
  %v249 = vsel %vm241, %v237, -inf
  %v250 = vrot.slane %v249, 4
  %v251 = vmax.f32 %v249, %v250
  %v252 = vrot.slane %v251, 2
  %v253 = vmax.f32 %v251, %v252
  %v254 = vrot.slane %v253, 1
  %v255 = vmax.f32 %v253, %v254
  %v256 = vsel %vm241, %v238, -inf
  %v257 = vrot.slane %v256, 4
  %v258 = vmax.f32 %v256, %v257
  %v259 = vrot.slane %v258, 2
  %v260 = vmax.f32 %v258, %v259
  %v261 = vrot.slane %v260, 1
  %v262 = vmax.f32 %v260, %v261
  %v263 = vsel %vm241, %v239, -inf
  %v264 = vrot.slane %v263, 4
  %v265 = vmax.f32 %v263, %v264
  %v266 = vrot.slane %v265, 2
  %v267 = vmax.f32 %v265, %v266
  %v268 = vrot.slane %v267, 1
  %v269 = vmax.f32 %v267, %v268
  %v270 = vsel %vm241, %v240, -inf
  %v271 = vrot.slane %v270, 4
  %v272 = vmax.f32 %v270, %v271
  %v273 = vrot.slane %v272, 2
  %v274 = vmax.f32 %v272, %v273
  %v275 = vrot.slane %v274, 1
  %v276 = vmax.f32 %v274, %v275
  %vm277 = vcmp.eq.f32.partialorder %v236, %v248
  %vm278 = vcmp.eq.f32.partialorder %v237, %v255
  %vm279 = vcmp.eq.f32.partialorder %v238, %v262
  %vm280 = vcmp.eq.f32.partialorder %v239, %v269
  %vm281 = vcmp.eq.f32.partialorder %v240, %v276
  %v282 = vsel %vm277, %v159, 5
  %v283 = vsel %vm278, %v159, 5
  %v284 = vsel %vm279, %v159, 5
  %v285 = vsel %vm280, %v159, 5
  %v286 = vsel %vm281, %v159, 5
  %v287 = vsel %vm241, %v282, 2147483647
  %v288 = vrot.slane %v287, 4
  %vm289 = vcmp.lt.s32.totalorder %v287, %v288
  %v290 = vsel %vm289, %v287, %v288
  %v291 = vrot.slane %v290, 2
  %vm292 = vcmp.lt.s32.totalorder %v290, %v291
  %v293 = vsel %vm292, %v290, %v291
  %v294 = vrot.slane %v293, 1
  %vm295 = vcmp.lt.s32.totalorder %v293, %v294
  %v296 = vsel %vm295, %v293, %v294
  %v297 = vsel %vm241, %v283, 2147483647
  %v298 = vrot.slane %v297, 4
  %vm299 = vcmp.lt.s32.totalorder %v297, %v298
  %v300 = vsel %vm299, %v297, %v298
  %v301 = vrot.slane %v300, 2
  %vm302 = vcmp.lt.s32.totalorder %v300, %v301
  %v303 = vsel %vm302, %v300, %v301
  %v304 = vrot.slane %v303, 1
  %vm305 = vcmp.lt.s32.totalorder %v303, %v304
  %v306 = vsel %vm305, %v303, %v304
  %v307 = vsel %vm241, %v284, 2147483647
  %v308 = vrot.slane %v307, 4
  %vm309 = vcmp.lt.s32.totalorder %v307, %v308
  %v310 = vsel %vm309, %v307, %v308
  %v311 = vrot.slane %v310, 2
  %vm312 = vcmp.lt.s32.totalorder %v310, %v311
  %v313 = vsel %vm312, %v310, %v311
  %v314 = vrot.slane %v313, 1
  %vm315 = vcmp.lt.s32.totalorder %v313, %v314
  %v316 = vsel %vm315, %v313, %v314
  %v317 = vsel %vm241, %v285, 2147483647
  %v318 = vrot.slane %v317, 4
  %vm319 = vcmp.lt.s32.totalorder %v317, %v318
  %v320 = vsel %vm319, %v317, %v318
  %v321 = vrot.slane %v320, 2
  %vm322 = vcmp.lt.s32.totalorder %v320, %v321
  %v323 = vsel %vm322, %v320, %v321
  %v324 = vrot.slane %v323, 1
  %vm325 = vcmp.lt.s32.totalorder %v323, %v324
  %v326 = vsel %vm325, %v323, %v324
  %v327 = vsel %vm241, %v286, 2147483647
  %v328 = vrot.slane %v327, 4
  %vm329 = vcmp.lt.s32.totalorder %v327, %v328
  %v330 = vsel %vm329, %v327, %v328
  %v331 = vrot.slane %v330, 2
  %vm332 = vcmp.lt.s32.totalorder %v330, %v331
  %v333 = vsel %vm332, %v330, %v331
  %v334 = vrot.slane %v333, 1
  %vm335 = vcmp.lt.s32.totalorder %v333, %v334
  %v336 = vsel %vm335, %v333, %v334
  %vm337 = vcmask 1041409
  %v338 = vsel %vm337, %v306, %v296
  %vm339 = vcmask 1042434
  %v340 = vsel %vm339, %v316, %v338
  %vm341 = vcmask 1043459
  %v342 = vsel %vm341, %v326, %v340
  %vm343 = vcmask 1044484
  %v344 = vsel %vm343, %v336, %v342
  %345 = vst.msk [vmem:[#allocation2] sm:$0x1f] %vm241, %v344
  %vm346 = vcmp.gt.f32.partialorder %v165, 0.0
  %v347 = vsel %vm346, 1, 0
  %v348 = vlaneseq
  %v349 = vshrl.u32 %v348, 7
  %v350 = vsub.s32 0, %v349
  %v351 = vrot.slane %v347, %v350
  %vm352 = vcmp.eq.s32.totalorder %v351, 1
  %v358 = vsel %vm337, %v255, %v248
  %v359 = vsel %vm339, %v262, %v358
  %v360 = vsel %vm341, %v269, %v359
  %v361 = vsel %vm343, %v276, %v360
  %v363 = vsel %vm352, %v361, %v161
  %s364 = scalar_lea.vmem %s0, 16
  %v365 = vld [vmem:[%s364] sm:$0x1f]
  %s366 = scalar_lea.vmem %s1, 2
  %v367 = vld [vmem:[%s366] sm:$0x1]
  %v368 = vadd.f32 %v363, %v125
  %v369 = vadd.f32 %v363, %v126
  %v370 = vadd.f32 %v363, %v127
  %v371 = vadd.f32 %v363, %v128
  %v372 = vadd.f32 %v363, %v129
  %v374 = vcombine.high %v365, %v365
  %v376 = vunpack.c.l.s4 1966171168
  %v377 = vunpack.c.0.s8 %v376
  %v378 = vlaneseq
  %v379 = vshrl.u32 %v378, 7
  %v380 = vsub.s32 %v377, %v379
  %v381 = vrot.slane %v365, %v380
  %v383 = vunpack.c.l.s4 1966171168
  %v384 = vunpack.c.0.s8 %v383
  %v385 = vlaneseq
  %v386 = vshrl.u32 %v385, 7
  %v387 = vsub.s32 %v384, %v386
  %v388 = vrot.slane %v374, %v387
  %v389 = vcombine.high %v381, %v381
  %v391 = vunpack.c.l.s4 1966171168
  %v392 = vunpack.c.0.s8 %v391
  %v393 = vlaneseq
  %v394 = vshrl.u32 %v393, 7
  %v395 = vsub.s32 %v392, %v394
  %v396 = vrot.slane %v381, %v395
  %v398 = vunpack.c.l.s4 1966171168
  %v399 = vunpack.c.0.s8 %v398
  %v400 = vlaneseq
  %v401 = vshrl.u32 %v400, 7
  %v402 = vsub.s32 %v399, %v401
  %v403 = vrot.slane %v388, %v402
  %v405 = vunpack.c.l.s4 1966171168
  %v406 = vunpack.c.0.s8 %v405
  %v407 = vlaneseq
  %v408 = vshrl.u32 %v407, 7
  %v409 = vsub.s32 %v406, %v408
  %v410 = vrot.slane %v389, %v409
  %v411 = vcombine.high %v396, %v396
  %v412 = vcombine.high %v410, %v410
  %v413 = vlaneseq
  %v414 = vshrl.u32 %v413, 7
  %v415 = vsub.s32 0, %v414
  %v416 = vrot.slane %v396, %v415
  %v417 = vlaneseq
  %v418 = vshrl.u32 %v417, 7
  %v419 = vsub.s32 0, %v418
  %v420 = vrot.slane %v410, %v419
  %v421 = vlaneseq
  %v422 = vshrl.u32 %v421, 7
  %v423 = vsub.s32 0, %v422
  %v424 = vrot.slane %v411, %v423
  %v425 = vlaneseq
  %v426 = vshrl.u32 %v425, 7
  %v427 = vsub.s32 0, %v426
  %v428 = vrot.slane %v412, %v427
  %v429 = vlaneseq
  %v430 = vshrl.u32 %v429, 7
  %v431 = vsub.s32 0, %v430
  %v432 = vrot.slane %v403, %v431
  %v438 = vadd.f32 %v368, %v416
  %v439 = vadd.f32 %v369, %v420
  %v440 = vadd.f32 %v370, %v424
  %v441 = vadd.f32 %v371, %v428
  %v442 = vadd.f32 %v372, %v432
  %v443 = vsel %vm241, %v438, -inf
  %v444 = vrot.slane %v443, 4
  %v445 = vmax.f32 %v443, %v444
  %v446 = vrot.slane %v445, 2
  %v447 = vmax.f32 %v445, %v446
  %v448 = vrot.slane %v447, 1
  %v449 = vmax.f32 %v447, %v448
  %v450 = vsel %vm241, %v439, -inf
  %v451 = vrot.slane %v450, 4
  %v452 = vmax.f32 %v450, %v451
  %v453 = vrot.slane %v452, 2
  %v454 = vmax.f32 %v452, %v453
  %v455 = vrot.slane %v454, 1
  %v456 = vmax.f32 %v454, %v455
  %v457 = vsel %vm241, %v440, -inf
  %v458 = vrot.slane %v457, 4
  %v459 = vmax.f32 %v457, %v458
  %v460 = vrot.slane %v459, 2
  %v461 = vmax.f32 %v459, %v460
  %v462 = vrot.slane %v461, 1
  %v463 = vmax.f32 %v461, %v462
  %v464 = vsel %vm241, %v441, -inf
  %v465 = vrot.slane %v464, 4
  %v466 = vmax.f32 %v464, %v465
  %v467 = vrot.slane %v466, 2
  %v468 = vmax.f32 %v466, %v467
  %v469 = vrot.slane %v468, 1
  %v470 = vmax.f32 %v468, %v469
  %v471 = vsel %vm241, %v442, -inf
  %v472 = vrot.slane %v471, 4
  %v473 = vmax.f32 %v471, %v472
  %v474 = vrot.slane %v473, 2
  %v475 = vmax.f32 %v473, %v474
  %v476 = vrot.slane %v475, 1
  %v477 = vmax.f32 %v475, %v476
  %vm478 = vcmp.eq.f32.partialorder %v438, %v449
  %vm479 = vcmp.eq.f32.partialorder %v439, %v456
  %vm480 = vcmp.eq.f32.partialorder %v440, %v463
  %vm481 = vcmp.eq.f32.partialorder %v441, %v470
  %vm482 = vcmp.eq.f32.partialorder %v442, %v477
  %v483 = vsel %vm478, %v159, 5
  %v484 = vsel %vm479, %v159, 5
  %v485 = vsel %vm480, %v159, 5
  %v486 = vsel %vm481, %v159, 5
  %v487 = vsel %vm482, %v159, 5
  %v488 = vsel %vm241, %v483, 2147483647
  %v489 = vrot.slane %v488, 4
  %vm490 = vcmp.lt.s32.totalorder %v488, %v489
  %v491 = vsel %vm490, %v488, %v489
  %v492 = vrot.slane %v491, 2
  %vm493 = vcmp.lt.s32.totalorder %v491, %v492
  %v494 = vsel %vm493, %v491, %v492
  %v495 = vrot.slane %v494, 1
  %vm496 = vcmp.lt.s32.totalorder %v494, %v495
  %v497 = vsel %vm496, %v494, %v495
  %v498 = vsel %vm241, %v484, 2147483647
  %v499 = vrot.slane %v498, 4
  %vm500 = vcmp.lt.s32.totalorder %v498, %v499
  %v501 = vsel %vm500, %v498, %v499
  %v502 = vrot.slane %v501, 2
  %vm503 = vcmp.lt.s32.totalorder %v501, %v502
  %v504 = vsel %vm503, %v501, %v502
  %v505 = vrot.slane %v504, 1
  %vm506 = vcmp.lt.s32.totalorder %v504, %v505
  %v507 = vsel %vm506, %v504, %v505
  %v508 = vsel %vm241, %v485, 2147483647
  %v509 = vrot.slane %v508, 4
  %vm510 = vcmp.lt.s32.totalorder %v508, %v509
  %v511 = vsel %vm510, %v508, %v509
  %v512 = vrot.slane %v511, 2
  %vm513 = vcmp.lt.s32.totalorder %v511, %v512
  %v514 = vsel %vm513, %v511, %v512
  %v515 = vrot.slane %v514, 1
  %vm516 = vcmp.lt.s32.totalorder %v514, %v515
  %v517 = vsel %vm516, %v514, %v515
  %v518 = vsel %vm241, %v486, 2147483647
  %v519 = vrot.slane %v518, 4
  %vm520 = vcmp.lt.s32.totalorder %v518, %v519
  %v521 = vsel %vm520, %v518, %v519
  %v522 = vrot.slane %v521, 2
  %vm523 = vcmp.lt.s32.totalorder %v521, %v522
  %v524 = vsel %vm523, %v521, %v522
  %v525 = vrot.slane %v524, 1
  %vm526 = vcmp.lt.s32.totalorder %v524, %v525
  %v527 = vsel %vm526, %v524, %v525
  %v528 = vsel %vm241, %v487, 2147483647
  %v529 = vrot.slane %v528, 4
  %vm530 = vcmp.lt.s32.totalorder %v528, %v529
  %v531 = vsel %vm530, %v528, %v529
  %v532 = vrot.slane %v531, 2
  %vm533 = vcmp.lt.s32.totalorder %v531, %v532
  %v534 = vsel %vm533, %v531, %v532
  %v535 = vrot.slane %v534, 1
  %vm536 = vcmp.lt.s32.totalorder %v534, %v535
  %v537 = vsel %vm536, %v534, %v535
  %v538 = vsel %vm337, %v507, %v497
  %v539 = vsel %vm339, %v517, %v538
  %v540 = vsel %vm341, %v527, %v539
  %v541 = vsel %vm343, %v537, %v540
  %s542 = scalar_lea.vmem [#allocation2], 8
  %543 = vst.msk [vmem:[%s542] sm:$0x1f] %vm241, %v541
  %vm544 = vcmp.gt.f32.partialorder %v367, 0.0
  %v545 = vsel %vm544, 1, 0
  %v546 = vlaneseq
  %v547 = vshrl.u32 %v546, 7
  %v548 = vsub.s32 0, %v547
  %v549 = vrot.slane %v545, %v548
  %vm550 = vcmp.eq.s32.totalorder %v549, 1
  %v556 = vsel %vm337, %v456, %v449
  %v557 = vsel %vm339, %v463, %v556
  %v558 = vsel %vm341, %v470, %v557
  %v559 = vsel %vm343, %v477, %v558
  %v561 = vsel %vm550, %v559, %v363
  %s562 = scalar_lea.vmem %s0, 24
  %v563 = vld [vmem:[%s562] sm:$0x1f]
  %s564 = scalar_lea.vmem %s1, 3
  %v565 = vld [vmem:[%s564] sm:$0x1]
  %v566 = vadd.f32 %v561, %v125
  %v567 = vadd.f32 %v561, %v126
  %v568 = vadd.f32 %v561, %v127
  %v569 = vadd.f32 %v561, %v128
  %v570 = vadd.f32 %v561, %v129
  %v572 = vcombine.high %v563, %v563
  %v574 = vunpack.c.l.s4 1966171168
  %v575 = vunpack.c.0.s8 %v574
  %v576 = vlaneseq
  %v577 = vshrl.u32 %v576, 7
  %v578 = vsub.s32 %v575, %v577
  %v579 = vrot.slane %v563, %v578
  %v581 = vunpack.c.l.s4 1966171168
  %v582 = vunpack.c.0.s8 %v581
  %v583 = vlaneseq
  %v584 = vshrl.u32 %v583, 7
  %v585 = vsub.s32 %v582, %v584
  %v586 = vrot.slane %v572, %v585
  %v587 = vcombine.high %v579, %v579
  %v589 = vunpack.c.l.s4 1966171168
  %v590 = vunpack.c.0.s8 %v589
  %v591 = vlaneseq
  %v592 = vshrl.u32 %v591, 7
  %v593 = vsub.s32 %v590, %v592
  %v594 = vrot.slane %v579, %v593
  %v596 = vunpack.c.l.s4 1966171168
  %v597 = vunpack.c.0.s8 %v596
  %v598 = vlaneseq
  %v599 = vshrl.u32 %v598, 7
  %v600 = vsub.s32 %v597, %v599
  %v601 = vrot.slane %v586, %v600
  %v603 = vunpack.c.l.s4 1966171168
  %v604 = vunpack.c.0.s8 %v603
  %v605 = vlaneseq
  %v606 = vshrl.u32 %v605, 7
  %v607 = vsub.s32 %v604, %v606
  %v608 = vrot.slane %v587, %v607
  %v609 = vcombine.high %v594, %v594
  %v610 = vcombine.high %v608, %v608
  %v611 = vlaneseq
  %v612 = vshrl.u32 %v611, 7
  %v613 = vsub.s32 0, %v612
  %v614 = vrot.slane %v594, %v613
  %v615 = vlaneseq
  %v616 = vshrl.u32 %v615, 7
  %v617 = vsub.s32 0, %v616
  %v618 = vrot.slane %v608, %v617
  %v619 = vlaneseq
  %v620 = vshrl.u32 %v619, 7
  %v621 = vsub.s32 0, %v620
  %v622 = vrot.slane %v609, %v621
  %v623 = vlaneseq
  %v624 = vshrl.u32 %v623, 7
  %v625 = vsub.s32 0, %v624
  %v626 = vrot.slane %v610, %v625
  %v627 = vlaneseq
  %v628 = vshrl.u32 %v627, 7
  %v629 = vsub.s32 0, %v628
  %v630 = vrot.slane %v601, %v629
  %v636 = vadd.f32 %v566, %v614
  %v637 = vadd.f32 %v567, %v618
  %v638 = vadd.f32 %v568, %v622
  %v639 = vadd.f32 %v569, %v626
  %v640 = vadd.f32 %v570, %v630
  %v641 = vsel %vm241, %v636, -inf
  %v642 = vrot.slane %v641, 4
  %v643 = vmax.f32 %v641, %v642
  %v644 = vrot.slane %v643, 2
  %v645 = vmax.f32 %v643, %v644
  %v646 = vrot.slane %v645, 1
  %v647 = vmax.f32 %v645, %v646
  %v648 = vsel %vm241, %v637, -inf
  %v649 = vrot.slane %v648, 4
  %v650 = vmax.f32 %v648, %v649
  %v651 = vrot.slane %v650, 2
  %v652 = vmax.f32 %v650, %v651
  %v653 = vrot.slane %v652, 1
  %v654 = vmax.f32 %v652, %v653
  %v655 = vsel %vm241, %v638, -inf
  %v656 = vrot.slane %v655, 4
  %v657 = vmax.f32 %v655, %v656
  %v658 = vrot.slane %v657, 2
  %v659 = vmax.f32 %v657, %v658
  %v660 = vrot.slane %v659, 1
  %v661 = vmax.f32 %v659, %v660
  %v662 = vsel %vm241, %v639, -inf
  %v663 = vrot.slane %v662, 4
  %v664 = vmax.f32 %v662, %v663
  %v665 = vrot.slane %v664, 2
  %v666 = vmax.f32 %v664, %v665
  %v667 = vrot.slane %v666, 1
  %v668 = vmax.f32 %v666, %v667
  %v669 = vsel %vm241, %v640, -inf
  %v670 = vrot.slane %v669, 4
  %v671 = vmax.f32 %v669, %v670
  %v672 = vrot.slane %v671, 2
  %v673 = vmax.f32 %v671, %v672
  %v674 = vrot.slane %v673, 1
  %v675 = vmax.f32 %v673, %v674
  %vm676 = vcmp.eq.f32.partialorder %v636, %v647
  %vm677 = vcmp.eq.f32.partialorder %v637, %v654
  %vm678 = vcmp.eq.f32.partialorder %v638, %v661
  %vm679 = vcmp.eq.f32.partialorder %v639, %v668
  %vm680 = vcmp.eq.f32.partialorder %v640, %v675
  %v681 = vsel %vm676, %v159, 5
  %v682 = vsel %vm677, %v159, 5
  %v683 = vsel %vm678, %v159, 5
  %v684 = vsel %vm679, %v159, 5
  %v685 = vsel %vm680, %v159, 5
  %v686 = vsel %vm241, %v681, 2147483647
  %v687 = vrot.slane %v686, 4
  %vm688 = vcmp.lt.s32.totalorder %v686, %v687
  %v689 = vsel %vm688, %v686, %v687
  %v690 = vrot.slane %v689, 2
  %vm691 = vcmp.lt.s32.totalorder %v689, %v690
  %v692 = vsel %vm691, %v689, %v690
  %v693 = vrot.slane %v692, 1
  %vm694 = vcmp.lt.s32.totalorder %v692, %v693
  %v695 = vsel %vm694, %v692, %v693
  %v696 = vsel %vm241, %v682, 2147483647
  %v697 = vrot.slane %v696, 4
  %vm698 = vcmp.lt.s32.totalorder %v696, %v697
  %v699 = vsel %vm698, %v696, %v697
  %v700 = vrot.slane %v699, 2
  %vm701 = vcmp.lt.s32.totalorder %v699, %v700
  %v702 = vsel %vm701, %v699, %v700
  %v703 = vrot.slane %v702, 1
  %vm704 = vcmp.lt.s32.totalorder %v702, %v703
  %v705 = vsel %vm704, %v702, %v703
  %v706 = vsel %vm241, %v683, 2147483647
  %v707 = vrot.slane %v706, 4
  %vm708 = vcmp.lt.s32.totalorder %v706, %v707
  %v709 = vsel %vm708, %v706, %v707
  %v710 = vrot.slane %v709, 2
  %vm711 = vcmp.lt.s32.totalorder %v709, %v710
  %v712 = vsel %vm711, %v709, %v710
  %v713 = vrot.slane %v712, 1
  %vm714 = vcmp.lt.s32.totalorder %v712, %v713
  %v715 = vsel %vm714, %v712, %v713
  %v716 = vsel %vm241, %v684, 2147483647
  %v717 = vrot.slane %v716, 4
  %vm718 = vcmp.lt.s32.totalorder %v716, %v717
  %v719 = vsel %vm718, %v716, %v717
  %v720 = vrot.slane %v719, 2
  %vm721 = vcmp.lt.s32.totalorder %v719, %v720
  %v722 = vsel %vm721, %v719, %v720
  %v723 = vrot.slane %v722, 1
  %vm724 = vcmp.lt.s32.totalorder %v722, %v723
  %v725 = vsel %vm724, %v722, %v723
  %v726 = vsel %vm241, %v685, 2147483647
  %v727 = vrot.slane %v726, 4
  %vm728 = vcmp.lt.s32.totalorder %v726, %v727
  %v729 = vsel %vm728, %v726, %v727
  %v730 = vrot.slane %v729, 2
  %vm731 = vcmp.lt.s32.totalorder %v729, %v730
  %v732 = vsel %vm731, %v729, %v730
  %v733 = vrot.slane %v732, 1
  %vm734 = vcmp.lt.s32.totalorder %v732, %v733
  %v735 = vsel %vm734, %v732, %v733
  %v736 = vsel %vm337, %v705, %v695
  %v737 = vsel %vm339, %v715, %v736
  %v738 = vsel %vm341, %v725, %v737
  %v739 = vsel %vm343, %v735, %v738
  %s740 = scalar_lea.vmem [#allocation2], 16
  %741 = vst.msk [vmem:[%s740] sm:$0x1f] %vm241, %v739
  %vm742 = vcmp.gt.f32.partialorder %v565, 0.0
  %v743 = vsel %vm742, 1, 0
  %v744 = vlaneseq
  %v745 = vshrl.u32 %v744, 7
  %v746 = vsub.s32 0, %v745
  %v747 = vrot.slane %v743, %v746
  %vm748 = vcmp.eq.s32.totalorder %v747, 1
  %v754 = vsel %vm337, %v654, %v647
  %v755 = vsel %vm339, %v661, %v754
  %v756 = vsel %vm341, %v668, %v755
  %v757 = vsel %vm343, %v675, %v756
  %v759 = vsel %vm748, %v757, %v561
  %s760 = scalar_lea.vmem %s0, 32
  %v761 = vld [vmem:[%s760] sm:$0x1f]
  %s762 = scalar_lea.vmem %s1, 4
  %v763 = vld [vmem:[%s762] sm:$0x1]
  %v764 = vadd.f32 %v759, %v125
  %v765 = vadd.f32 %v759, %v126
  %v766 = vadd.f32 %v759, %v127
  %v767 = vadd.f32 %v759, %v128
  %v768 = vadd.f32 %v759, %v129
  %v770 = vcombine.high %v761, %v761
  %v772 = vunpack.c.l.s4 1966171168
  %v773 = vunpack.c.0.s8 %v772
  %v774 = vlaneseq
  %v775 = vshrl.u32 %v774, 7
  %v776 = vsub.s32 %v773, %v775
  %v777 = vrot.slane %v761, %v776
  %v779 = vunpack.c.l.s4 1966171168
  %v780 = vunpack.c.0.s8 %v779
  %v781 = vlaneseq
  %v782 = vshrl.u32 %v781, 7
  %v783 = vsub.s32 %v780, %v782
  %v784 = vrot.slane %v770, %v783
  %v785 = vcombine.high %v777, %v777
  %v787 = vunpack.c.l.s4 1966171168
  %v788 = vunpack.c.0.s8 %v787
  %v789 = vlaneseq
  %v790 = vshrl.u32 %v789, 7
  %v791 = vsub.s32 %v788, %v790
  %v792 = vrot.slane %v777, %v791
  %v794 = vunpack.c.l.s4 1966171168
  %v795 = vunpack.c.0.s8 %v794
  %v796 = vlaneseq
  %v797 = vshrl.u32 %v796, 7
  %v798 = vsub.s32 %v795, %v797
  %v799 = vrot.slane %v784, %v798
  %v801 = vunpack.c.l.s4 1966171168
  %v802 = vunpack.c.0.s8 %v801
  %v803 = vlaneseq
  %v804 = vshrl.u32 %v803, 7
  %v805 = vsub.s32 %v802, %v804
  %v806 = vrot.slane %v785, %v805
  %v807 = vcombine.high %v792, %v792
  %v808 = vcombine.high %v806, %v806
  %v809 = vlaneseq
  %v810 = vshrl.u32 %v809, 7
  %v811 = vsub.s32 0, %v810
  %v812 = vrot.slane %v792, %v811
  %v813 = vlaneseq
  %v814 = vshrl.u32 %v813, 7
  %v815 = vsub.s32 0, %v814
  %v816 = vrot.slane %v806, %v815
  %v817 = vlaneseq
  %v818 = vshrl.u32 %v817, 7
  %v819 = vsub.s32 0, %v818
  %v820 = vrot.slane %v807, %v819
  %v821 = vlaneseq
  %v822 = vshrl.u32 %v821, 7
  %v823 = vsub.s32 0, %v822
  %v824 = vrot.slane %v808, %v823
  %v825 = vlaneseq
  %v826 = vshrl.u32 %v825, 7
  %v827 = vsub.s32 0, %v826
  %v828 = vrot.slane %v799, %v827
  %v834 = vadd.f32 %v764, %v812
  %v835 = vadd.f32 %v765, %v816
  %v836 = vadd.f32 %v766, %v820
  %v837 = vadd.f32 %v767, %v824
  %v838 = vadd.f32 %v768, %v828
  %v839 = vsel %vm241, %v834, -inf
  %v840 = vrot.slane %v839, 4
  %v841 = vmax.f32 %v839, %v840
  %v842 = vrot.slane %v841, 2
  %v843 = vmax.f32 %v841, %v842
  %v844 = vrot.slane %v843, 1
  %v845 = vmax.f32 %v843, %v844
  %v846 = vsel %vm241, %v835, -inf
  %v847 = vrot.slane %v846, 4
  %v848 = vmax.f32 %v846, %v847
  %v849 = vrot.slane %v848, 2
  %v850 = vmax.f32 %v848, %v849
  %v851 = vrot.slane %v850, 1
  %v852 = vmax.f32 %v850, %v851
  %v853 = vsel %vm241, %v836, -inf
  %v854 = vrot.slane %v853, 4
  %v855 = vmax.f32 %v853, %v854
  %v856 = vrot.slane %v855, 2
  %v857 = vmax.f32 %v855, %v856
  %v858 = vrot.slane %v857, 1
  %v859 = vmax.f32 %v857, %v858
  %v860 = vsel %vm241, %v837, -inf
  %v861 = vrot.slane %v860, 4
  %v862 = vmax.f32 %v860, %v861
  %v863 = vrot.slane %v862, 2
  %v864 = vmax.f32 %v862, %v863
  %v865 = vrot.slane %v864, 1
  %v866 = vmax.f32 %v864, %v865
  %v867 = vsel %vm241, %v838, -inf
  %v868 = vrot.slane %v867, 4
  %v869 = vmax.f32 %v867, %v868
  %v870 = vrot.slane %v869, 2
  %v871 = vmax.f32 %v869, %v870
  %v872 = vrot.slane %v871, 1
  %v873 = vmax.f32 %v871, %v872
  %vm874 = vcmp.eq.f32.partialorder %v834, %v845
  %vm875 = vcmp.eq.f32.partialorder %v835, %v852
  %vm876 = vcmp.eq.f32.partialorder %v836, %v859
  %vm877 = vcmp.eq.f32.partialorder %v837, %v866
  %vm878 = vcmp.eq.f32.partialorder %v838, %v873
  %v879 = vsel %vm874, %v159, 5
  %v880 = vsel %vm875, %v159, 5
  %v881 = vsel %vm876, %v159, 5
  %v882 = vsel %vm877, %v159, 5
  %v883 = vsel %vm878, %v159, 5
  %v884 = vsel %vm241, %v879, 2147483647
  %v885 = vrot.slane %v884, 4
  %vm886 = vcmp.lt.s32.totalorder %v884, %v885
  %v887 = vsel %vm886, %v884, %v885
  %v888 = vrot.slane %v887, 2
  %vm889 = vcmp.lt.s32.totalorder %v887, %v888
  %v890 = vsel %vm889, %v887, %v888
  %v891 = vrot.slane %v890, 1
  %vm892 = vcmp.lt.s32.totalorder %v890, %v891
  %v893 = vsel %vm892, %v890, %v891
  %v894 = vsel %vm241, %v880, 2147483647
  %v895 = vrot.slane %v894, 4
  %vm896 = vcmp.lt.s32.totalorder %v894, %v895
  %v897 = vsel %vm896, %v894, %v895
  %v898 = vrot.slane %v897, 2
  %vm899 = vcmp.lt.s32.totalorder %v897, %v898
  %v900 = vsel %vm899, %v897, %v898
  %v901 = vrot.slane %v900, 1
  %vm902 = vcmp.lt.s32.totalorder %v900, %v901
  %v903 = vsel %vm902, %v900, %v901
  %v904 = vsel %vm241, %v881, 2147483647
  %v905 = vrot.slane %v904, 4
  %vm906 = vcmp.lt.s32.totalorder %v904, %v905
  %v907 = vsel %vm906, %v904, %v905
  %v908 = vrot.slane %v907, 2
  %vm909 = vcmp.lt.s32.totalorder %v907, %v908
  %v910 = vsel %vm909, %v907, %v908
  %v911 = vrot.slane %v910, 1
  %vm912 = vcmp.lt.s32.totalorder %v910, %v911
  %v913 = vsel %vm912, %v910, %v911
  %v914 = vsel %vm241, %v882, 2147483647
  %v915 = vrot.slane %v914, 4
  %vm916 = vcmp.lt.s32.totalorder %v914, %v915
  %v917 = vsel %vm916, %v914, %v915
  %v918 = vrot.slane %v917, 2
  %vm919 = vcmp.lt.s32.totalorder %v917, %v918
  %v920 = vsel %vm919, %v917, %v918
  %v921 = vrot.slane %v920, 1
  %vm922 = vcmp.lt.s32.totalorder %v920, %v921
  %v923 = vsel %vm922, %v920, %v921
  %v924 = vsel %vm241, %v883, 2147483647
  %v925 = vrot.slane %v924, 4
  %vm926 = vcmp.lt.s32.totalorder %v924, %v925
  %v927 = vsel %vm926, %v924, %v925
  %v928 = vrot.slane %v927, 2
  %vm929 = vcmp.lt.s32.totalorder %v927, %v928
  %v930 = vsel %vm929, %v927, %v928
  %v931 = vrot.slane %v930, 1
  %vm932 = vcmp.lt.s32.totalorder %v930, %v931
  %v933 = vsel %vm932, %v930, %v931
  %v934 = vsel %vm337, %v903, %v893
  %v935 = vsel %vm339, %v913, %v934
  %v936 = vsel %vm341, %v923, %v935
  %v937 = vsel %vm343, %v933, %v936
  %s938 = scalar_lea.vmem [#allocation2], 24
  %939 = vst.msk [vmem:[%s938] sm:$0x1f] %vm241, %v937
  %vm940 = vcmp.gt.f32.partialorder %v763, 0.0
  %v941 = vsel %vm940, 1, 0
  %v942 = vlaneseq
  %v943 = vshrl.u32 %v942, 7
  %v944 = vsub.s32 0, %v943
  %v945 = vrot.slane %v941, %v944
  %vm946 = vcmp.eq.s32.totalorder %v945, 1
  %v952 = vsel %vm337, %v852, %v845
  %v953 = vsel %vm339, %v859, %v952
  %v954 = vsel %vm341, %v866, %v953
  %v955 = vsel %vm343, %v873, %v954
  %v957 = vsel %vm946, %v955, %v759
  %s958 = scalar_lea.vmem %s0, 40
  %v959 = vld [vmem:[%s958] sm:$0x1f]
  %s960 = scalar_lea.vmem %s1, 5
  %v961 = vld [vmem:[%s960] sm:$0x1]
  %v962 = vadd.f32 %v957, %v125
  %v963 = vadd.f32 %v957, %v126
  %v964 = vadd.f32 %v957, %v127
  %v965 = vadd.f32 %v957, %v128
  %v966 = vadd.f32 %v957, %v129
  %v968 = vcombine.high %v959, %v959
  %v970 = vunpack.c.l.s4 1966171168
  %v971 = vunpack.c.0.s8 %v970
  %v972 = vlaneseq
  %v973 = vshrl.u32 %v972, 7
  %v974 = vsub.s32 %v971, %v973
  %v975 = vrot.slane %v959, %v974
  %v977 = vunpack.c.l.s4 1966171168
  %v978 = vunpack.c.0.s8 %v977
  %v979 = vlaneseq
  %v980 = vshrl.u32 %v979, 7
  %v981 = vsub.s32 %v978, %v980
  %v982 = vrot.slane %v968, %v981
  %v983 = vcombine.high %v975, %v975
  %v985 = vunpack.c.l.s4 1966171168
  %v986 = vunpack.c.0.s8 %v985
  %v987 = vlaneseq
  %v988 = vshrl.u32 %v987, 7
  %v989 = vsub.s32 %v986, %v988
  %v990 = vrot.slane %v975, %v989
  %v992 = vunpack.c.l.s4 1966171168
  %v993 = vunpack.c.0.s8 %v992
  %v994 = vlaneseq
  %v995 = vshrl.u32 %v994, 7
  %v996 = vsub.s32 %v993, %v995
  %v997 = vrot.slane %v982, %v996
  %v999 = vunpack.c.l.s4 1966171168
  %v1000 = vunpack.c.0.s8 %v999
  %v1001 = vlaneseq
  %v1002 = vshrl.u32 %v1001, 7
  %v1003 = vsub.s32 %v1000, %v1002
  %v1004 = vrot.slane %v983, %v1003
  %v1005 = vcombine.high %v990, %v990
  %v1006 = vcombine.high %v1004, %v1004
  %v1007 = vlaneseq
  %v1008 = vshrl.u32 %v1007, 7
  %v1009 = vsub.s32 0, %v1008
  %v1010 = vrot.slane %v990, %v1009
  %v1011 = vlaneseq
  %v1012 = vshrl.u32 %v1011, 7
  %v1013 = vsub.s32 0, %v1012
  %v1014 = vrot.slane %v1004, %v1013
  %v1015 = vlaneseq
  %v1016 = vshrl.u32 %v1015, 7
  %v1017 = vsub.s32 0, %v1016
  %v1018 = vrot.slane %v1005, %v1017
  %v1019 = vlaneseq
  %v1020 = vshrl.u32 %v1019, 7
  %v1021 = vsub.s32 0, %v1020
  %v1022 = vrot.slane %v1006, %v1021
  %v1023 = vlaneseq
  %v1024 = vshrl.u32 %v1023, 7
  %v1025 = vsub.s32 0, %v1024
  %v1026 = vrot.slane %v997, %v1025
  %v1032 = vadd.f32 %v962, %v1010
  %v1033 = vadd.f32 %v963, %v1014
  %v1034 = vadd.f32 %v964, %v1018
  %v1035 = vadd.f32 %v965, %v1022
  %v1036 = vadd.f32 %v966, %v1026
  %v1037 = vsel %vm241, %v1032, -inf
  %v1038 = vrot.slane %v1037, 4
  %v1039 = vmax.f32 %v1037, %v1038
  %v1040 = vrot.slane %v1039, 2
  %v1041 = vmax.f32 %v1039, %v1040
  %v1042 = vrot.slane %v1041, 1
  %v1043 = vmax.f32 %v1041, %v1042
  %v1044 = vsel %vm241, %v1033, -inf
  %v1045 = vrot.slane %v1044, 4
  %v1046 = vmax.f32 %v1044, %v1045
  %v1047 = vrot.slane %v1046, 2
  %v1048 = vmax.f32 %v1046, %v1047
  %v1049 = vrot.slane %v1048, 1
  %v1050 = vmax.f32 %v1048, %v1049
  %v1051 = vsel %vm241, %v1034, -inf
  %v1052 = vrot.slane %v1051, 4
  %v1053 = vmax.f32 %v1051, %v1052
  %v1054 = vrot.slane %v1053, 2
  %v1055 = vmax.f32 %v1053, %v1054
  %v1056 = vrot.slane %v1055, 1
  %v1057 = vmax.f32 %v1055, %v1056
  %v1058 = vsel %vm241, %v1035, -inf
  %v1059 = vrot.slane %v1058, 4
  %v1060 = vmax.f32 %v1058, %v1059
  %v1061 = vrot.slane %v1060, 2
  %v1062 = vmax.f32 %v1060, %v1061
  %v1063 = vrot.slane %v1062, 1
  %v1064 = vmax.f32 %v1062, %v1063
  %v1065 = vsel %vm241, %v1036, -inf
  %v1066 = vrot.slane %v1065, 4
  %v1067 = vmax.f32 %v1065, %v1066
  %v1068 = vrot.slane %v1067, 2
  %v1069 = vmax.f32 %v1067, %v1068
  %v1070 = vrot.slane %v1069, 1
  %v1071 = vmax.f32 %v1069, %v1070
  %vm1072 = vcmp.eq.f32.partialorder %v1032, %v1043
  %vm1073 = vcmp.eq.f32.partialorder %v1033, %v1050
  %vm1074 = vcmp.eq.f32.partialorder %v1034, %v1057
  %vm1075 = vcmp.eq.f32.partialorder %v1035, %v1064
  %vm1076 = vcmp.eq.f32.partialorder %v1036, %v1071
  %v1077 = vsel %vm1072, %v159, 5
  %v1078 = vsel %vm1073, %v159, 5
  %v1079 = vsel %vm1074, %v159, 5
  %v1080 = vsel %vm1075, %v159, 5
  %v1081 = vsel %vm1076, %v159, 5
  %v1082 = vsel %vm241, %v1077, 2147483647
  %v1083 = vrot.slane %v1082, 4
  %vm1084 = vcmp.lt.s32.totalorder %v1082, %v1083
  %v1085 = vsel %vm1084, %v1082, %v1083
  %v1086 = vrot.slane %v1085, 2
  %vm1087 = vcmp.lt.s32.totalorder %v1085, %v1086
  %v1088 = vsel %vm1087, %v1085, %v1086
  %v1089 = vrot.slane %v1088, 1
  %vm1090 = vcmp.lt.s32.totalorder %v1088, %v1089
  %v1091 = vsel %vm1090, %v1088, %v1089
  %v1092 = vsel %vm241, %v1078, 2147483647
  %v1093 = vrot.slane %v1092, 4
  %vm1094 = vcmp.lt.s32.totalorder %v1092, %v1093
  %v1095 = vsel %vm1094, %v1092, %v1093
  %v1096 = vrot.slane %v1095, 2
  %vm1097 = vcmp.lt.s32.totalorder %v1095, %v1096
  %v1098 = vsel %vm1097, %v1095, %v1096
  %v1099 = vrot.slane %v1098, 1
  %vm1100 = vcmp.lt.s32.totalorder %v1098, %v1099
  %v1101 = vsel %vm1100, %v1098, %v1099
  %v1102 = vsel %vm241, %v1079, 2147483647
  %v1103 = vrot.slane %v1102, 4
  %vm1104 = vcmp.lt.s32.totalorder %v1102, %v1103
  %v1105 = vsel %vm1104, %v1102, %v1103
  %v1106 = vrot.slane %v1105, 2
  %vm1107 = vcmp.lt.s32.totalorder %v1105, %v1106
  %v1108 = vsel %vm1107, %v1105, %v1106
  %v1109 = vrot.slane %v1108, 1
  %vm1110 = vcmp.lt.s32.totalorder %v1108, %v1109
  %v1111 = vsel %vm1110, %v1108, %v1109
  %v1112 = vsel %vm241, %v1080, 2147483647
  %v1113 = vrot.slane %v1112, 4
  %vm1114 = vcmp.lt.s32.totalorder %v1112, %v1113
  %v1115 = vsel %vm1114, %v1112, %v1113
  %v1116 = vrot.slane %v1115, 2
  %vm1117 = vcmp.lt.s32.totalorder %v1115, %v1116
  %v1118 = vsel %vm1117, %v1115, %v1116
  %v1119 = vrot.slane %v1118, 1
  %vm1120 = vcmp.lt.s32.totalorder %v1118, %v1119
  %v1121 = vsel %vm1120, %v1118, %v1119
  %v1122 = vsel %vm241, %v1081, 2147483647
  %v1123 = vrot.slane %v1122, 4
  %vm1124 = vcmp.lt.s32.totalorder %v1122, %v1123
  %v1125 = vsel %vm1124, %v1122, %v1123
  %v1126 = vrot.slane %v1125, 2
  %vm1127 = vcmp.lt.s32.totalorder %v1125, %v1126
  %v1128 = vsel %vm1127, %v1125, %v1126
  %v1129 = vrot.slane %v1128, 1
  %vm1130 = vcmp.lt.s32.totalorder %v1128, %v1129
  %v1131 = vsel %vm1130, %v1128, %v1129
  %v1132 = vsel %vm337, %v1101, %v1091
  %v1133 = vsel %vm339, %v1111, %v1132
  %v1134 = vsel %vm341, %v1121, %v1133
  %v1135 = vsel %vm343, %v1131, %v1134
  %s1136 = scalar_lea.vmem [#allocation2], 32
  %1137 = vst.msk [vmem:[%s1136] sm:$0x1f] %vm241, %v1135
  %vm1138 = vcmp.gt.f32.partialorder %v961, 0.0
  %v1139 = vsel %vm1138, 1, 0
  %v1140 = vlaneseq
  %v1141 = vshrl.u32 %v1140, 7
  %v1142 = vsub.s32 0, %v1141
  %v1143 = vrot.slane %v1139, %v1142
  %vm1144 = vcmp.eq.s32.totalorder %v1143, 1
  %v1150 = vsel %vm337, %v1050, %v1043
  %v1151 = vsel %vm339, %v1057, %v1150
  %v1152 = vsel %vm341, %v1064, %v1151
  %v1153 = vsel %vm343, %v1071, %v1152
  %v1155 = vsel %vm1144, %v1153, %v957
  %s1156 = scalar_lea.vmem %s0, 48
  %v1157 = vld [vmem:[%s1156] sm:$0x1f]
  %s1158 = scalar_lea.vmem %s1, 6
  %v1159 = vld [vmem:[%s1158] sm:$0x1]
  %v1160 = vadd.f32 %v1155, %v125
  %v1161 = vadd.f32 %v1155, %v126
  %v1162 = vadd.f32 %v1155, %v127
  %v1163 = vadd.f32 %v1155, %v128
  %v1164 = vadd.f32 %v1155, %v129
  %v1166 = vcombine.high %v1157, %v1157
  %v1168 = vunpack.c.l.s4 1966171168
  %v1169 = vunpack.c.0.s8 %v1168
  %v1170 = vlaneseq
  %v1171 = vshrl.u32 %v1170, 7
  %v1172 = vsub.s32 %v1169, %v1171
  %v1173 = vrot.slane %v1157, %v1172
  %v1175 = vunpack.c.l.s4 1966171168
  %v1176 = vunpack.c.0.s8 %v1175
  %v1177 = vlaneseq
  %v1178 = vshrl.u32 %v1177, 7
  %v1179 = vsub.s32 %v1176, %v1178
  %v1180 = vrot.slane %v1166, %v1179
  %v1181 = vcombine.high %v1173, %v1173
  %v1183 = vunpack.c.l.s4 1966171168
  %v1184 = vunpack.c.0.s8 %v1183
  %v1185 = vlaneseq
  %v1186 = vshrl.u32 %v1185, 7
  %v1187 = vsub.s32 %v1184, %v1186
  %v1188 = vrot.slane %v1173, %v1187
  %v1190 = vunpack.c.l.s4 1966171168
  %v1191 = vunpack.c.0.s8 %v1190
  %v1192 = vlaneseq
  %v1193 = vshrl.u32 %v1192, 7
  %v1194 = vsub.s32 %v1191, %v1193
  %v1195 = vrot.slane %v1180, %v1194
  %v1197 = vunpack.c.l.s4 1966171168
  %v1198 = vunpack.c.0.s8 %v1197
  %v1199 = vlaneseq
  %v1200 = vshrl.u32 %v1199, 7
  %v1201 = vsub.s32 %v1198, %v1200
  %v1202 = vrot.slane %v1181, %v1201
  %v1203 = vcombine.high %v1188, %v1188
  %v1204 = vcombine.high %v1202, %v1202
  %v1205 = vlaneseq
  %v1206 = vshrl.u32 %v1205, 7
  %v1207 = vsub.s32 0, %v1206
  %v1208 = vrot.slane %v1188, %v1207
  %v1209 = vlaneseq
  %v1210 = vshrl.u32 %v1209, 7
  %v1211 = vsub.s32 0, %v1210
  %v1212 = vrot.slane %v1202, %v1211
  %v1213 = vlaneseq
  %v1214 = vshrl.u32 %v1213, 7
  %v1215 = vsub.s32 0, %v1214
  %v1216 = vrot.slane %v1203, %v1215
  %v1217 = vlaneseq
  %v1218 = vshrl.u32 %v1217, 7
  %v1219 = vsub.s32 0, %v1218
  %v1220 = vrot.slane %v1204, %v1219
  %v1221 = vlaneseq
  %v1222 = vshrl.u32 %v1221, 7
  %v1223 = vsub.s32 0, %v1222
  %v1224 = vrot.slane %v1195, %v1223
  %v1230 = vadd.f32 %v1160, %v1208
  %v1231 = vadd.f32 %v1161, %v1212
  %v1232 = vadd.f32 %v1162, %v1216
  %v1233 = vadd.f32 %v1163, %v1220
  %v1234 = vadd.f32 %v1164, %v1224
  %v1235 = vsel %vm241, %v1230, -inf
  %v1236 = vrot.slane %v1235, 4
  %v1237 = vmax.f32 %v1235, %v1236
  %v1238 = vrot.slane %v1237, 2
  %v1239 = vmax.f32 %v1237, %v1238
  %v1240 = vrot.slane %v1239, 1
  %v1241 = vmax.f32 %v1239, %v1240
  %v1242 = vsel %vm241, %v1231, -inf
  %v1243 = vrot.slane %v1242, 4
  %v1244 = vmax.f32 %v1242, %v1243
  %v1245 = vrot.slane %v1244, 2
  %v1246 = vmax.f32 %v1244, %v1245
  %v1247 = vrot.slane %v1246, 1
  %v1248 = vmax.f32 %v1246, %v1247
  %v1249 = vsel %vm241, %v1232, -inf
  %v1250 = vrot.slane %v1249, 4
  %v1251 = vmax.f32 %v1249, %v1250
  %v1252 = vrot.slane %v1251, 2
  %v1253 = vmax.f32 %v1251, %v1252
  %v1254 = vrot.slane %v1253, 1
  %v1255 = vmax.f32 %v1253, %v1254
  %v1256 = vsel %vm241, %v1233, -inf
  %v1257 = vrot.slane %v1256, 4
  %v1258 = vmax.f32 %v1256, %v1257
  %v1259 = vrot.slane %v1258, 2
  %v1260 = vmax.f32 %v1258, %v1259
  %v1261 = vrot.slane %v1260, 1
  %v1262 = vmax.f32 %v1260, %v1261
  %v1263 = vsel %vm241, %v1234, -inf
  %v1264 = vrot.slane %v1263, 4
  %v1265 = vmax.f32 %v1263, %v1264
  %v1266 = vrot.slane %v1265, 2
  %v1267 = vmax.f32 %v1265, %v1266
  %v1268 = vrot.slane %v1267, 1
  %v1269 = vmax.f32 %v1267, %v1268
  %vm1270 = vcmp.eq.f32.partialorder %v1230, %v1241
  %vm1271 = vcmp.eq.f32.partialorder %v1231, %v1248
  %vm1272 = vcmp.eq.f32.partialorder %v1232, %v1255
  %vm1273 = vcmp.eq.f32.partialorder %v1233, %v1262
  %vm1274 = vcmp.eq.f32.partialorder %v1234, %v1269
  %v1275 = vsel %vm1270, %v159, 5
  %v1276 = vsel %vm1271, %v159, 5
  %v1277 = vsel %vm1272, %v159, 5
  %v1278 = vsel %vm1273, %v159, 5
  %v1279 = vsel %vm1274, %v159, 5
  %v1280 = vsel %vm241, %v1275, 2147483647
  %v1281 = vrot.slane %v1280, 4
  %vm1282 = vcmp.lt.s32.totalorder %v1280, %v1281
  %v1283 = vsel %vm1282, %v1280, %v1281
  %v1284 = vrot.slane %v1283, 2
  %vm1285 = vcmp.lt.s32.totalorder %v1283, %v1284
  %v1286 = vsel %vm1285, %v1283, %v1284
  %v1287 = vrot.slane %v1286, 1
  %vm1288 = vcmp.lt.s32.totalorder %v1286, %v1287
  %v1289 = vsel %vm1288, %v1286, %v1287
  %v1290 = vsel %vm241, %v1276, 2147483647
  %v1291 = vrot.slane %v1290, 4
  %vm1292 = vcmp.lt.s32.totalorder %v1290, %v1291
  %v1293 = vsel %vm1292, %v1290, %v1291
  %v1294 = vrot.slane %v1293, 2
  %vm1295 = vcmp.lt.s32.totalorder %v1293, %v1294
  %v1296 = vsel %vm1295, %v1293, %v1294
  %v1297 = vrot.slane %v1296, 1
  %vm1298 = vcmp.lt.s32.totalorder %v1296, %v1297
  %v1299 = vsel %vm1298, %v1296, %v1297
  %v1300 = vsel %vm241, %v1277, 2147483647
  %v1301 = vrot.slane %v1300, 4
  %vm1302 = vcmp.lt.s32.totalorder %v1300, %v1301
  %v1303 = vsel %vm1302, %v1300, %v1301
  %v1304 = vrot.slane %v1303, 2
  %vm1305 = vcmp.lt.s32.totalorder %v1303, %v1304
  %v1306 = vsel %vm1305, %v1303, %v1304
  %v1307 = vrot.slane %v1306, 1
  %vm1308 = vcmp.lt.s32.totalorder %v1306, %v1307
  %v1309 = vsel %vm1308, %v1306, %v1307
  %v1310 = vsel %vm241, %v1278, 2147483647
  %v1311 = vrot.slane %v1310, 4
  %vm1312 = vcmp.lt.s32.totalorder %v1310, %v1311
  %v1313 = vsel %vm1312, %v1310, %v1311
  %v1314 = vrot.slane %v1313, 2
  %vm1315 = vcmp.lt.s32.totalorder %v1313, %v1314
  %v1316 = vsel %vm1315, %v1313, %v1314
  %v1317 = vrot.slane %v1316, 1
  %vm1318 = vcmp.lt.s32.totalorder %v1316, %v1317
  %v1319 = vsel %vm1318, %v1316, %v1317
  %v1320 = vsel %vm241, %v1279, 2147483647
  %v1321 = vrot.slane %v1320, 4
  %vm1322 = vcmp.lt.s32.totalorder %v1320, %v1321
  %v1323 = vsel %vm1322, %v1320, %v1321
  %v1324 = vrot.slane %v1323, 2
  %vm1325 = vcmp.lt.s32.totalorder %v1323, %v1324
  %v1326 = vsel %vm1325, %v1323, %v1324
  %v1327 = vrot.slane %v1326, 1
  %vm1328 = vcmp.lt.s32.totalorder %v1326, %v1327
  %v1329 = vsel %vm1328, %v1326, %v1327
  %v1330 = vsel %vm337, %v1299, %v1289
  %v1331 = vsel %vm339, %v1309, %v1330
  %v1332 = vsel %vm341, %v1319, %v1331
  %v1333 = vsel %vm343, %v1329, %v1332
  %s1334 = scalar_lea.vmem [#allocation2], 40
  %1335 = vst.msk [vmem:[%s1334] sm:$0x1f] %vm241, %v1333
  %vm1336 = vcmp.gt.f32.partialorder %v1159, 0.0
  %v1337 = vsel %vm1336, 1, 0
  %v1338 = vlaneseq
  %v1339 = vshrl.u32 %v1338, 7
  %v1340 = vsub.s32 0, %v1339
  %v1341 = vrot.slane %v1337, %v1340
  %vm1342 = vcmp.eq.s32.totalorder %v1341, 1
  %v1348 = vsel %vm337, %v1248, %v1241
  %v1349 = vsel %vm339, %v1255, %v1348
  %v1350 = vsel %vm341, %v1262, %v1349
  %v1351 = vsel %vm343, %v1269, %v1350
  %v1353 = vsel %vm1342, %v1351, %v1155
  %s1354 = scalar_lea.vmem %s0, 56
  %v1355 = vld [vmem:[%s1354] sm:$0x1f]
  %s1356 = scalar_lea.vmem %s1, 7
  %v1357 = vld [vmem:[%s1356] sm:$0x1]
  %v1358 = vadd.f32 %v1353, %v125
  %v1359 = vadd.f32 %v1353, %v126
  %v1360 = vadd.f32 %v1353, %v127
  %v1361 = vadd.f32 %v1353, %v128
  %v1362 = vadd.f32 %v1353, %v129
  %v1364 = vcombine.high %v1355, %v1355
  %v1366 = vunpack.c.l.s4 1966171168
  %v1367 = vunpack.c.0.s8 %v1366
  %v1368 = vlaneseq
  %v1369 = vshrl.u32 %v1368, 7
  %v1370 = vsub.s32 %v1367, %v1369
  %v1371 = vrot.slane %v1355, %v1370
  %v1373 = vunpack.c.l.s4 1966171168
  %v1374 = vunpack.c.0.s8 %v1373
  %v1375 = vlaneseq
  %v1376 = vshrl.u32 %v1375, 7
  %v1377 = vsub.s32 %v1374, %v1376
  %v1378 = vrot.slane %v1364, %v1377
  %v1379 = vcombine.high %v1371, %v1371
  %v1381 = vunpack.c.l.s4 1966171168
  %v1382 = vunpack.c.0.s8 %v1381
  %v1383 = vlaneseq
  %v1384 = vshrl.u32 %v1383, 7
  %v1385 = vsub.s32 %v1382, %v1384
  %v1386 = vrot.slane %v1371, %v1385
  %v1388 = vunpack.c.l.s4 1966171168
  %v1389 = vunpack.c.0.s8 %v1388
  %v1390 = vlaneseq
  %v1391 = vshrl.u32 %v1390, 7
  %v1392 = vsub.s32 %v1389, %v1391
  %v1393 = vrot.slane %v1378, %v1392
  %v1395 = vunpack.c.l.s4 1966171168
  %v1396 = vunpack.c.0.s8 %v1395
  %v1397 = vlaneseq
  %v1398 = vshrl.u32 %v1397, 7
  %v1399 = vsub.s32 %v1396, %v1398
  %v1400 = vrot.slane %v1379, %v1399
  %v1401 = vcombine.high %v1386, %v1386
  %v1402 = vcombine.high %v1400, %v1400
  %v1403 = vlaneseq
  %v1404 = vshrl.u32 %v1403, 7
  %v1405 = vsub.s32 0, %v1404
  %v1406 = vrot.slane %v1386, %v1405
  %v1407 = vlaneseq
  %v1408 = vshrl.u32 %v1407, 7
  %v1409 = vsub.s32 0, %v1408
  %v1410 = vrot.slane %v1400, %v1409
  %v1411 = vlaneseq
  %v1412 = vshrl.u32 %v1411, 7
  %v1413 = vsub.s32 0, %v1412
  %v1414 = vrot.slane %v1401, %v1413
  %v1415 = vlaneseq
  %v1416 = vshrl.u32 %v1415, 7
  %v1417 = vsub.s32 0, %v1416
  %v1418 = vrot.slane %v1402, %v1417
  %v1419 = vlaneseq
  %v1420 = vshrl.u32 %v1419, 7
  %v1421 = vsub.s32 0, %v1420
  %v1422 = vrot.slane %v1393, %v1421
  %v1428 = vadd.f32 %v1358, %v1406
  %v1429 = vadd.f32 %v1359, %v1410
  %v1430 = vadd.f32 %v1360, %v1414
  %v1431 = vadd.f32 %v1361, %v1418
  %v1432 = vadd.f32 %v1362, %v1422
  %v1433 = vsel %vm241, %v1428, -inf
  %v1434 = vrot.slane %v1433, 4
  %v1435 = vmax.f32 %v1433, %v1434
  %v1436 = vrot.slane %v1435, 2
  %v1437 = vmax.f32 %v1435, %v1436
  %v1438 = vrot.slane %v1437, 1
  %v1439 = vmax.f32 %v1437, %v1438
  %v1440 = vsel %vm241, %v1429, -inf
  %v1441 = vrot.slane %v1440, 4
  %v1442 = vmax.f32 %v1440, %v1441
  %v1443 = vrot.slane %v1442, 2
  %v1444 = vmax.f32 %v1442, %v1443
  %v1445 = vrot.slane %v1444, 1
  %v1446 = vmax.f32 %v1444, %v1445
  %v1447 = vsel %vm241, %v1430, -inf
  %v1448 = vrot.slane %v1447, 4
  %v1449 = vmax.f32 %v1447, %v1448
  %v1450 = vrot.slane %v1449, 2
  %v1451 = vmax.f32 %v1449, %v1450
  %v1452 = vrot.slane %v1451, 1
  %v1453 = vmax.f32 %v1451, %v1452
  %v1454 = vsel %vm241, %v1431, -inf
  %v1455 = vrot.slane %v1454, 4
  %v1456 = vmax.f32 %v1454, %v1455
  %v1457 = vrot.slane %v1456, 2
  %v1458 = vmax.f32 %v1456, %v1457
  %v1459 = vrot.slane %v1458, 1
  %v1460 = vmax.f32 %v1458, %v1459
  %v1461 = vsel %vm241, %v1432, -inf
  %v1462 = vrot.slane %v1461, 4
  %v1463 = vmax.f32 %v1461, %v1462
  %v1464 = vrot.slane %v1463, 2
  %v1465 = vmax.f32 %v1463, %v1464
  %v1466 = vrot.slane %v1465, 1
  %v1467 = vmax.f32 %v1465, %v1466
  %vm1468 = vcmp.eq.f32.partialorder %v1428, %v1439
  %vm1469 = vcmp.eq.f32.partialorder %v1429, %v1446
  %vm1470 = vcmp.eq.f32.partialorder %v1430, %v1453
  %vm1471 = vcmp.eq.f32.partialorder %v1431, %v1460
  %vm1472 = vcmp.eq.f32.partialorder %v1432, %v1467
  %v1473 = vsel %vm1468, %v159, 5
  %v1474 = vsel %vm1469, %v159, 5
  %v1475 = vsel %vm1470, %v159, 5
  %v1476 = vsel %vm1471, %v159, 5
  %v1477 = vsel %vm1472, %v159, 5
  %v1478 = vsel %vm241, %v1473, 2147483647
  %v1479 = vrot.slane %v1478, 4
  %vm1480 = vcmp.lt.s32.totalorder %v1478, %v1479
  %v1481 = vsel %vm1480, %v1478, %v1479
  %v1482 = vrot.slane %v1481, 2
  %vm1483 = vcmp.lt.s32.totalorder %v1481, %v1482
  %v1484 = vsel %vm1483, %v1481, %v1482
  %v1485 = vrot.slane %v1484, 1
  %vm1486 = vcmp.lt.s32.totalorder %v1484, %v1485
  %v1487 = vsel %vm1486, %v1484, %v1485
  %v1488 = vsel %vm241, %v1474, 2147483647
  %v1489 = vrot.slane %v1488, 4
  %vm1490 = vcmp.lt.s32.totalorder %v1488, %v1489
  %v1491 = vsel %vm1490, %v1488, %v1489
  %v1492 = vrot.slane %v1491, 2
  %vm1493 = vcmp.lt.s32.totalorder %v1491, %v1492
  %v1494 = vsel %vm1493, %v1491, %v1492
  %v1495 = vrot.slane %v1494, 1
  %vm1496 = vcmp.lt.s32.totalorder %v1494, %v1495
  %v1497 = vsel %vm1496, %v1494, %v1495
  %v1498 = vsel %vm241, %v1475, 2147483647
  %v1499 = vrot.slane %v1498, 4
  %vm1500 = vcmp.lt.s32.totalorder %v1498, %v1499
  %v1501 = vsel %vm1500, %v1498, %v1499
  %v1502 = vrot.slane %v1501, 2
  %vm1503 = vcmp.lt.s32.totalorder %v1501, %v1502
  %v1504 = vsel %vm1503, %v1501, %v1502
  %v1505 = vrot.slane %v1504, 1
  %vm1506 = vcmp.lt.s32.totalorder %v1504, %v1505
  %v1507 = vsel %vm1506, %v1504, %v1505
  %v1508 = vsel %vm241, %v1476, 2147483647
  %v1509 = vrot.slane %v1508, 4
  %vm1510 = vcmp.lt.s32.totalorder %v1508, %v1509
  %v1511 = vsel %vm1510, %v1508, %v1509
  %v1512 = vrot.slane %v1511, 2
  %vm1513 = vcmp.lt.s32.totalorder %v1511, %v1512
  %v1514 = vsel %vm1513, %v1511, %v1512
  %v1515 = vrot.slane %v1514, 1
  %vm1516 = vcmp.lt.s32.totalorder %v1514, %v1515
  %v1517 = vsel %vm1516, %v1514, %v1515
  %v1518 = vsel %vm241, %v1477, 2147483647
  %v1519 = vrot.slane %v1518, 4
  %vm1520 = vcmp.lt.s32.totalorder %v1518, %v1519
  %v1521 = vsel %vm1520, %v1518, %v1519
  %v1522 = vrot.slane %v1521, 2
  %vm1523 = vcmp.lt.s32.totalorder %v1521, %v1522
  %v1524 = vsel %vm1523, %v1521, %v1522
  %v1525 = vrot.slane %v1524, 1
  %vm1526 = vcmp.lt.s32.totalorder %v1524, %v1525
  %v1527 = vsel %vm1526, %v1524, %v1525
  %v1528 = vsel %vm337, %v1497, %v1487
  %v1529 = vsel %vm339, %v1507, %v1528
  %v1530 = vsel %vm341, %v1517, %v1529
  %v1531 = vsel %vm343, %v1527, %v1530
  %s1532 = scalar_lea.vmem [#allocation2], 48
  %1533 = vst.msk [vmem:[%s1532] sm:$0x1f] %vm241, %v1531
  %vm1534 = vcmp.gt.f32.partialorder %v1357, 0.0
  %v1535 = vsel %vm1534, 1, 0
  %v1536 = vlaneseq
  %v1537 = vshrl.u32 %v1536, 7
  %v1538 = vsub.s32 0, %v1537
  %v1539 = vrot.slane %v1535, %v1538
  %vm1540 = vcmp.eq.s32.totalorder %v1539, 1
  %v1546 = vsel %vm337, %v1446, %v1439
  %v1547 = vsel %vm339, %v1453, %v1546
  %v1548 = vsel %vm341, %v1460, %v1547
  %v1549 = vsel %vm343, %v1467, %v1548
  %v1551 = vsel %vm1540, %v1549, %v1353
  %v1552 = vadd.f32 %v1551, %v131
  %v1553 = vsel %vm241, %v1552, -inf
  %v1554 = vrot.slane %v1553, 4
  %v1555 = vmax.f32 %v1553, %v1554
  %v1556 = vrot.slane %v1555, 2
  %v1557 = vmax.f32 %v1555, %v1556
  %v1558 = vrot.slane %v1557, 1
  %v1559 = vmax.f32 %v1557, %v1558
  %vm1560 = vcmp.eq.f32.partialorder %v1552, %v1559
  %v1561 = vsel %vm1560, %v159, 5
  %v1562 = vsel %vm241, %v1561, 2147483647
  %v1563 = vrot.slane %v1562, 4
  %vm1564 = vcmp.lt.s32.totalorder %v1562, %v1563
  %v1565 = vsel %vm1564, %v1562, %v1563
  %v1566 = vrot.slane %v1565, 2
  %vm1567 = vcmp.lt.s32.totalorder %v1565, %v1566
  %v1568 = vsel %vm1567, %v1565, %v1566
  %v1569 = vrot.slane %v1568, 1
  %vm1570 = vcmp.lt.s32.totalorder %v1568, %v1569
  %v1571 = vsel %vm1570, %v1568, %v1569
  %s1572 = scalar_lea.vmem [#allocation2], 56
  %1573 = vst.msk [vmem:[%s1572] sm:$0x1f] %vm241, 0
  %v1574 = vld [vmem:[%s1572] sm:$0x1f]
  %vm1575 = vcmp.eq.s32.totalorder %v159, 0
  %v1576 = vsel %vm1575, %v1574, 0
  %v1577 = vsel %vm241, %v1576, 0
  %v1578 = vrot.slane %v1577, 4
  %v1579 = vadd.s32 %v1577, %v1578
  %v1580 = vrot.slane %v1579, 2
  %v1581 = vadd.s32 %v1579, %v1580
  %v1582 = vrot.slane %v1581, 1
  %v1583 = vadd.s32 %v1581, %v1582
  %vm1584 = vcmp.eq.s32.totalorder %v157, 7
  %vm1585 = vcmp.gt.s32.totalorder %v157, 7
  %v1586 = vsel %vm1585, %v1583, 0
  %v1587 = vsel %vm1584, %v1571, %v1586
  %s1588 = scalar_lea.vmem %s8, 7
  %1589 = vst.msk [vmem:[%s1588] sm:$0x1] %vm140, %v1587
  %v1590 = vld [vmem:[%s1532] sm:$0x1f]
  %v1591 = vlaneseq
  %v1592 = vshrl.u32 %v1591, 7
  %v1593 = vsub.s32 0, %v1592
  %v1594 = vrot.slane %v1587, %v1593
  %vm1595 = vcmp.eq.s32.totalorder %v159, %v1594
  %v1596 = vsel %vm1595, %v1590, 0
  %v1597 = vsel %vm241, %v1596, 0
  %v1598 = vrot.slane %v1597, 4
  %v1599 = vadd.s32 %v1597, %v1598
  %v1600 = vrot.slane %v1599, 2
  %v1601 = vadd.s32 %v1599, %v1600
  %v1602 = vrot.slane %v1601, 1
  %v1603 = vadd.s32 %v1601, %v1602
  %vm1604 = vcmp.eq.s32.totalorder %v157, 6
  %vm1605 = vcmp.gt.s32.totalorder %v157, 6
  %v1606 = vsel %vm1605, %v1603, 0
  %v1607 = vsel %vm1604, %v1571, %v1606
  %s1608 = scalar_lea.vmem %s8, 6
  %1609 = vst.msk [vmem:[%s1608] sm:$0x1] %vm140, %v1607
  %v1610 = vld [vmem:[%s1334] sm:$0x1f]
  %v1611 = vlaneseq
  %v1612 = vshrl.u32 %v1611, 7
  %v1613 = vsub.s32 0, %v1612
  %v1614 = vrot.slane %v1607, %v1613
  %vm1615 = vcmp.eq.s32.totalorder %v159, %v1614
  %v1616 = vsel %vm1615, %v1610, 0
  %v1617 = vsel %vm241, %v1616, 0
  %v1618 = vrot.slane %v1617, 4
  %v1619 = vadd.s32 %v1617, %v1618
  %v1620 = vrot.slane %v1619, 2
  %v1621 = vadd.s32 %v1619, %v1620
  %v1622 = vrot.slane %v1621, 1
  %v1623 = vadd.s32 %v1621, %v1622
  %vm1624 = vcmp.eq.s32.totalorder %v157, 5
  %vm1625 = vcmp.gt.s32.totalorder %v157, 5
  %v1626 = vsel %vm1625, %v1623, 0
  %v1627 = vsel %vm1624, %v1571, %v1626
  %s1628 = scalar_lea.vmem %s8, 5
  %1629 = vst.msk [vmem:[%s1628] sm:$0x1] %vm140, %v1627
  %v1630 = vld [vmem:[%s1136] sm:$0x1f]
  %v1631 = vlaneseq
  %v1632 = vshrl.u32 %v1631, 7
  %v1633 = vsub.s32 0, %v1632
  %v1634 = vrot.slane %v1627, %v1633
  %vm1635 = vcmp.eq.s32.totalorder %v159, %v1634
  %v1636 = vsel %vm1635, %v1630, 0
  %v1637 = vsel %vm241, %v1636, 0
  %v1638 = vrot.slane %v1637, 4
  %v1639 = vadd.s32 %v1637, %v1638
  %v1640 = vrot.slane %v1639, 2
  %v1641 = vadd.s32 %v1639, %v1640
  %v1642 = vrot.slane %v1641, 1
  %v1643 = vadd.s32 %v1641, %v1642
  %vm1644 = vcmp.eq.s32.totalorder %v157, 4
  %vm1645 = vcmp.gt.s32.totalorder %v157, 4
  %v1646 = vsel %vm1645, %v1643, 0
  %v1647 = vsel %vm1644, %v1571, %v1646
  %s1648 = scalar_lea.vmem %s8, 4
  %1649 = vst.msk [vmem:[%s1648] sm:$0x1] %vm140, %v1647
  %v1650 = vld [vmem:[%s938] sm:$0x1f]
  %v1651 = vlaneseq
  %v1652 = vshrl.u32 %v1651, 7
  %v1653 = vsub.s32 0, %v1652
  %v1654 = vrot.slane %v1647, %v1653
  %vm1655 = vcmp.eq.s32.totalorder %v159, %v1654
  %v1656 = vsel %vm1655, %v1650, 0
  %v1657 = vsel %vm241, %v1656, 0
  %v1658 = vrot.slane %v1657, 4
  %v1659 = vadd.s32 %v1657, %v1658
  %v1660 = vrot.slane %v1659, 2
  %v1661 = vadd.s32 %v1659, %v1660
  %v1662 = vrot.slane %v1661, 1
  %v1663 = vadd.s32 %v1661, %v1662
  %vm1664 = vcmp.eq.s32.totalorder %v157, 3
  %vm1665 = vcmp.gt.s32.totalorder %v157, 3
  %v1666 = vsel %vm1665, %v1663, 0
  %v1667 = vsel %vm1664, %v1571, %v1666
  %s1668 = scalar_lea.vmem %s8, 3
  %1669 = vst.msk [vmem:[%s1668] sm:$0x1] %vm140, %v1667
  %v1670 = vld [vmem:[%s740] sm:$0x1f]
  %v1671 = vlaneseq
  %v1672 = vshrl.u32 %v1671, 7
  %v1673 = vsub.s32 0, %v1672
  %v1674 = vrot.slane %v1667, %v1673
  %vm1675 = vcmp.eq.s32.totalorder %v159, %v1674
  %v1676 = vsel %vm1675, %v1670, 0
  %v1677 = vsel %vm241, %v1676, 0
  %v1678 = vrot.slane %v1677, 4
  %v1679 = vadd.s32 %v1677, %v1678
  %v1680 = vrot.slane %v1679, 2
  %v1681 = vadd.s32 %v1679, %v1680
  %v1682 = vrot.slane %v1681, 1
  %v1683 = vadd.s32 %v1681, %v1682
  %vm1684 = vcmp.eq.s32.totalorder %v157, 2
  %vm1685 = vcmp.gt.s32.totalorder %v157, 2
  %v1686 = vsel %vm1685, %v1683, 0
  %v1687 = vsel %vm1684, %v1571, %v1686
  %s1688 = scalar_lea.vmem %s8, 2
  %1689 = vst.msk [vmem:[%s1688] sm:$0x1] %vm140, %v1687
  %v1690 = vld [vmem:[%s542] sm:$0x1f]
  %v1691 = vlaneseq
  %v1692 = vshrl.u32 %v1691, 7
  %v1693 = vsub.s32 0, %v1692
  %v1694 = vrot.slane %v1687, %v1693
  %vm1695 = vcmp.eq.s32.totalorder %v159, %v1694
  %v1696 = vsel %vm1695, %v1690, 0
  %v1697 = vsel %vm241, %v1696, 0
  %v1698 = vrot.slane %v1697, 4
  %v1699 = vadd.s32 %v1697, %v1698
  %v1700 = vrot.slane %v1699, 2
  %v1701 = vadd.s32 %v1699, %v1700
  %v1702 = vrot.slane %v1701, 1
  %v1703 = vadd.s32 %v1701, %v1702
  %vm1704 = vcmp.eq.s32.totalorder %v157, 1
  %vm1705 = vcmp.gt.s32.totalorder %v157, 1
  %v1706 = vsel %vm1705, %v1703, 0
  %v1707 = vsel %vm1704, %v1571, %v1706
  %s1708 = scalar_lea.vmem %s8, 1
  %1709 = vst.msk [vmem:[%s1708] sm:$0x1] %vm140, %v1707
  %v1710 = vld [vmem:[#allocation2] sm:$0x1f]
  %v1711 = vlaneseq
  %v1712 = vshrl.u32 %v1711, 7
  %v1713 = vsub.s32 0, %v1712
  %v1714 = vrot.slane %v1707, %v1713
  %vm1715 = vcmp.eq.s32.totalorder %v159, %v1714
  %v1716 = vsel %vm1715, %v1710, 0
  %v1717 = vsel %vm241, %v1716, 0
  %v1718 = vrot.slane %v1717, 4
  %v1719 = vadd.s32 %v1717, %v1718
  %v1720 = vrot.slane %v1719, 2
  %v1721 = vadd.s32 %v1719, %v1720
  %v1722 = vrot.slane %v1721, 1
  %v1723 = vadd.s32 %v1721, %v1722
  %vm1724 = vcmp.eq.s32.totalorder %v157, 0
  %vm1725 = vcmp.gt.s32.totalorder %v157, 0
  %v1726 = vsel %vm1725, %v1723, 0
  %v1727 = vsel %vm1724, %v1571, %v1726
  %1728 = vst.msk [vmem:[%s8] sm:$0x1] %vm140, %v1727
  // Predicated region
  $region34: #{baseline_forward.3} parent=0 // pred_check
    _
  $region35: #{baseline_forward.3} parent=0 // pred_check_branch
    %1730 = sbr.rel (0) target = $region37
  $region36: #{baseline_forward.3} parent=0 // pred_region
    _
  $region37: #{baseline_forward.3} parent=0 // pred_fallthru
    _
  // Predicated region
  $region38: #{baseline_forward.3} parent=0 // pred_check
    _
  $region39: #{baseline_forward.3} parent=0 // pred_check_branch
    %1732 = sbr.rel (0) target = $region41
  $region40: #{baseline_forward.3} parent=0 // pred_region
    _
  $region41: #{baseline_forward.3} parent=0 // pred_fallthru
    _
  // Predicated region
  $region42: #{baseline_forward.3} parent=0 // pred_check
    _
  $region43: #{baseline_forward.3} parent=0 // pred_check_branch
    %1734 = sbr.rel (0) target = $region45
  $region44: #{baseline_forward.3} parent=0 // pred_region
    _
  $region45: #{baseline_forward.3} parent=0 // pred_fallthru
    _
  // Predicated region
  $region46: #{baseline_forward.3} parent=0 // pred_check
    _
  $region47: #{baseline_forward.3} parent=0 // pred_check_branch
    %1736 = sbr.rel (0) target = $region49
  $region48: #{baseline_forward.3} parent=0 // pred_region
    _
  $region49: #{baseline_forward.3} parent=0 // pred_fallthru
    _

</llo_original>
